<compile_context>
chip_gen: v6e
topology: v6e:2x2x1
jax: 0.10.0
libtpu: 0.0.40
codegen_flags: <defaults>
</compile_context>

<pallas_src>
import functools
import math

import jax
import jax.numpy as jnp
from jax.experimental import pallas as pl
from jax.experimental.pallas import tpu as pltpu


def _make_decoder_kernel(hidden, num_n_tiles):
    """Kernel body for grid point (layer, n_tile)."""

    def kernel(emb_g_ref, x0_ref, h0_ref, c0_ref, w_ref, b_ref,
               h_out_ref, c_out_ref, xh_scr):
        # emb_g_ref: [4, B, TN]  precomputed emb @ W_emb tile (f32, layer 0 only)
        # x0_ref:    [B, H]      h_{t-1}~ (attention feedback) or zeros
        # h0_ref:    [B, H]      this layer's previous hidden state (full width)
        # c0_ref:    [B, TN]     this layer's previous cell state, column tile
        # w_ref:     [4, 2H, TN] fused (x|h) -> gate weights, gate-major i,f,g,o
        # b_ref:     [4, 1, TN]  combined bias b_ih + b_hh (f32)
        # xh_scr:    [2, B, 2H]  bf16 double-buffered packed LHS carry
        layer = pl.program_id(0)
        nt = pl.program_id(1)
        tn = h_out_ref.shape[-1]

        # Layer l reads slot l%2 and writes its new h into slot (l+1)%2.
        slot_in = layer % 2
        slot_out = (layer + 1) % 2

        # First tile of every layer: stage this layer's h_{t-1} (bf16) into the
        # second half of the packed LHS.
        @pl.when(nt == 0)
        def _():
            xh_scr[slot_in, :, pl.ds(hidden, hidden)] = (
                h0_ref[...].astype(jnp.bfloat16))

        # Layer 0's x-input is h_{t-1}~ (or zeros).
        @pl.when(jnp.logical_and(layer == 0, nt == 0))
        def _():
            xh_scr[0, :, pl.ds(0, hidden)] = x0_ref[...].astype(jnp.bfloat16)

        xh = xh_scr[slot_in]                       # [B, 2H] bf16 MXU LHS
        c_prev = c0_ref[...].astype(jnp.float32)   # [B, TN]

        # Layer-0-only embedding term enabled by a scalar 0/1 multiplier
        # (cheap VPU mul; no ref accumulate, no per-layer branch on values).
        emb_scale = jnp.where(layer == 0, 1.0, 0.0).astype(jnp.float32)

        # One fused-K matmul per gate: [B, 2H] @ [2H, TN] -> f32 accumulate.
        # Pre-activations stay in vregs (no VMEM scratch round trips).
        gates = []
        for k in range(4):                         # gate order (i, f, g, o)
            gk = jnp.dot(xh, w_ref[k], preferred_element_type=jnp.float32)
            gk = gk + b_ref[k] + emb_g_ref[k] * emb_scale
            gates.append(gk)

        i_g = jax.nn.sigmoid(gates[0])
        f_g = jax.nn.sigmoid(gates[1])
        g_g = jnp.tanh(gates[2])
        o_g = jax.nn.sigmoid(gates[3])

        c_new = f_g * c_prev + i_g * g_g
        h_new = o_g * jnp.tanh(c_new)

        h_out_ref[...] = h_new.astype(h_out_ref.dtype)
        c_out_ref[...] = c_new.astype(c_out_ref.dtype)

        # Carry this column tile of h_new (bf16) into the next layer's x half.
        # Statically unrolled predicated stores (num_n_tiles is small) avoid
        # dynamic lane offsets.
        h_carry = h_new.astype(jnp.bfloat16)
        for n in range(num_n_tiles):
            @pl.when(nt == n)
            def _(n=n):
                xh_scr[slot_out, :, pl.ds(n * tn, tn)] = h_carry

    return kernel


def _kernel_vmem_bytes(batch, hidden, block_n):
    """Working-set estimate for one pipelined grid step (double-buffered)."""
    f32, bf16 = 4, 2
    per_step = (
        4 * batch * block_n * f32              # emb_g tile
        + batch * hidden * f32                 # x0 (constant)
        + batch * hidden * f32                 # h_0 full-layer block (LHS half)
        + batch * block_n * f32                # c_0 tile
        + 4 * 2 * hidden * block_n * bf16      # fused [4, 2H, TN] weight tile
        + 4 * 1 * block_n * f32                # bias tile
        + 2 * batch * block_n * f32            # h_n + c_n tiles
    )
    scratch = 2 * batch * 2 * hidden * bf16    # packed double-buffered carry
    return 2 * per_step + scratch              # x2: pipeline double buffering


def _pick_block_n(batch, hidden, budget_bytes=40 * 1024 * 1024):
    """Largest lane-aligned divisor of H whose working set fits the budget."""
    if hidden % 128 != 0:
        return hidden  # unaligned / tiny H: single N tile (block == full dim)
    for tn in range(hidden, 127, -128):
        if hidden % tn == 0 and _kernel_vmem_bytes(batch, hidden, tn) <= budget_bytes:
            return tn
    return 128


def _vmem_limit_bytes(batch, hidden, block_n):
    need = _kernel_vmem_bytes(batch, hidden, block_n) + (4 << 20)  # headroom
    return int(min(max(need, 16 << 20), 64 << 20))  # v7x-safe cap (64 MiB/TC)


@functools.partial(jax.jit, static_argnames=("block_n",))
def _decoder_step(emb_g, x0, h_0, c_0, w, b, *, block_n):
    """Fused n_layers single-timestep LSTM step.

    emb_g: [4, B, H] f32   x0: [B, H]   h_0, c_0: [L, B, H]
    w: [L, 4, 2H, H] bf16 (fused x|h weights, gate-major)   b: [L, 4, 1, H] f32
    returns h_n, c_n: [L, B, H]
    """
    n_layers, batch, hidden = h_0.shape
    assert hidden % block_n == 0
    num_n_tiles = hidden // block_n
    kernel = _make_decoder_kernel(hidden, num_n_tiles)

    grid_spec = pltpu.PrefetchScalarGridSpec(
        num_scalar_prefetch=0,
        grid=(n_layers, num_n_tiles),
        in_specs=[
            pl.BlockSpec((4, batch, block_n), lambda l, n: (0, 0, n)),        # emb_g
            pl.BlockSpec((batch, hidden), lambda l, n: (0, 0)),               # x0
            pl.BlockSpec((None, batch, hidden), lambda l, n: (l, 0, 0)),      # h_0
            pl.BlockSpec((None, batch, block_n), lambda l, n: (l, 0, n)),     # c_0
            pl.BlockSpec((None, 4, 2 * hidden, block_n),
                         lambda l, n: (l, 0, 0, n)),                          # w
            pl.BlockSpec((None, 4, 1, block_n), lambda l, n: (l, 0, 0, n)),   # b
        ],
        out_specs=(
            pl.BlockSpec((None, batch, block_n), lambda l, n: (l, 0, n)),     # h_n
            pl.BlockSpec((None, batch, block_n), lambda l, n: (l, 0, n)),     # c_n
        ),
        scratch_shapes=[
            pltpu.VMEM((2, batch, 2 * hidden), jnp.bfloat16),  # packed LHS carry
        ],
    )

    return pl.pallas_call(
        kernel,
        out_shape=(
            jax.ShapeDtypeStruct((n_layers, batch, hidden), h_0.dtype),
            jax.ShapeDtypeStruct((n_layers, batch, hidden), c_0.dtype),
        ),
        grid_spec=grid_spec,
        # Operand order: (emb_g, x0, h_0, c_0, w, b). Keep indices in sync if
        # operands are added/reordered.
        input_output_aliases={2: 0, 3: 1},   # h_0 -> h_n, c_0 -> c_n in place
        compiler_params=pltpu.CompilerParams(
            # Layers chain through the VMEM carry; N-tiles share the carry
            # scratch, so both axes are sequential.
            dimension_semantics=("arbitrary", "arbitrary"),
            vmem_limit_bytes=_vmem_limit_bytes(batch, hidden, block_n),
        ),
    )(emb_g, x0, h_0, c_0, w, b)


def init_decoder_params(key, word_vec_size, hidden_size, n_layers,
                        param_dtype=jnp.bfloat16):
    """nn.LSTM(word_vec_size + hidden_size, hidden_size, n_layers)-shaped
    params, stored transposed, gate-major (i, f, g, o), x|h fused along K."""
    W, H, L = word_vec_size, hidden_size, n_layers
    bound = 1.0 / math.sqrt(H)

    key, ke = jax.random.split(key)
    # rows 0..W-1 of torch layer-0 W_ih^T (the part multiplying emb_t)
    w_emb = jax.random.uniform(ke, (4, W, H), jnp.float32, -bound, bound)

    ws, bs = [], []
    for _ in range(L):
        key, k1, k2, k3, k4 = jax.random.split(key, 5)
        # rows 0..H-1: x-input weights (layer 0: W_tilde; layers >= 1: W_ih)
        # rows H..2H-1: W_hh
        w_x = jax.random.uniform(k1, (4, H, H), jnp.float32, -bound, bound)
        w_h = jax.random.uniform(k2, (4, H, H), jnp.float32, -bound, bound)
        ws.append(jnp.concatenate([w_x, w_h], axis=1))        # [4, 2H, H]
        b_ih = jax.random.uniform(k3, (4, H), jnp.float32, -bound, bound)
        b_hh = jax.random.uniform(k4, (4, H), jnp.float32, -bound, bound)
        bs.append((b_ih + b_hh).reshape(4, 1, H))

    return {
        "w_emb": w_emb.astype(param_dtype),           # [4, W, H]
        "w": jnp.stack(ws).astype(param_dtype),       # [L, 4, 2H, H]
        "b": jnp.stack(bs),                           # [L, 4, 1, H] f32
    }


def decoder_forward(params, emb_t, h_t_1_tilde, h_t_1, *, block_n=None):
    """Mirrors Decoder.forward.

    emb_t:       [B, 1, word_vec_size]
    h_t_1_tilde: [B, 1, hidden_size] or None
    h_t_1:       (h_0, c_0), each [n_layers, B, hidden_size]
    returns (y, (h_n, c_n)): y [B, 1, H]; h_n, c_n [n_layers, B, H]
    """
    h_0, c_0 = h_t_1
    batch = emb_t.shape[0]
    hidden = h_0.shape[-1]

    emb = emb_t[:, 0, :]
    # Layer-0 embedding contribution computed in plain XLA (tiny matmul) so
    # the [4, W, H] slab never occupies per-layer VMEM inside the kernel.
    emb_g = jnp.einsum("bw,kwh->kbh", emb.astype(jnp.bfloat16),
                       params["w_emb"], preferred_element_type=jnp.float32)

    if h_t_1_tilde is None:
        x0 = jnp.zeros((batch, hidden), dtype=jnp.float32)
    else:
        x0 = h_t_1_tilde[:, 0, :].astype(jnp.float32)

    if block_n is None:
        block_n = _pick_block_n(batch, hidden)

    h_n, c_n = _decoder_step(emb_g, x0, h_0, c_0, params["w"], params["b"],
                             block_n=block_n)
    y = h_n[-1][:, None, :]
    return y, (h_n, c_n)


def _reference_forward(params, emb_t, h_t_1_tilde, h_t_1):
    """Pure-JAX reference with the same bf16-input / f32-accumulate matmuls."""
    w, w_emb, b = params["w"], params["w_emb"], params["b"]
    h_0, c_0 = h_t_1
    n_layers, batch, hidden = h_0.shape

    emb_b = emb_t[:, 0, :].astype(jnp.bfloat16)
    emb_g = jnp.einsum("bw,kwh->kbh", emb_b, w_emb,
                       preferred_element_type=jnp.float32)

    if h_t_1_tilde is None:
        x = jnp.zeros((batch, hidden), jnp.float32)
    else:
        x = h_t_1_tilde[:, 0, :].astype(jnp.float32)

    hs, cs = [], []
    for l in range(n_layers):
        xh = jnp.concatenate(
            [x, h_0[l].astype(jnp.float32)], axis=-1).astype(jnp.bfloat16)
        g = []
        for k in range(4):
            gk = jnp.dot(xh, w[l, k],
                         preferred_element_type=jnp.float32) + b[l, k]
            if l == 0:
                gk = gk + emb_g[k]
            g.append(gk)
        i_g = jax.nn.sigmoid(g[0])
        f_g = jax.nn.sigmoid(g[1])
        g_g = jnp.tanh(g[2])
        o_g = jax.nn.sigmoid(g[3])
        c_new = f_g * c_0[l].astype(jnp.float32) + i_g * g_g
        h_new = o_g * jnp.tanh(c_new)
        hs.append(h_new)
        cs.append(c_new)
        x = h_new
    h_n = jnp.stack(hs).astype(h_0.dtype)
    c_n = jnp.stack(cs).astype(c_0.dtype)
    return h_n[-1][:, None, :], (h_n, c_n)


def _run_case(word_vec_size, hidden_size, n_layers, batch, *, block_n=None,
              seed=0):
    key = jax.random.PRNGKey(seed)
    kp, k1, k2, k3, k4 = jax.random.split(key, 5)
    params = init_decoder_params(kp, word_vec_size, hidden_size, n_layers)

    emb_t = jax.random.normal(k1, (batch, 1, word_vec_size), jnp.float32)
    h_t_1_tilde = jax.random.normal(k2, (batch, 1, hidden_size), jnp.float32)
    h_0 = jax.random.normal(k3, (n_layers, batch, hidden_size), jnp.float32)
    c_0 = jax.random.normal(k4, (n_layers, batch, hidden_size), jnp.float32)

    y, (h_n, c_n) = decoder_forward(params, emb_t, h_t_1_tilde, (h_0, c_0),
                                    block_n=block_n)
    jax.block_until_ready((y, h_n, c_n))

    assert y.shape == (batch, 1, hidden_size)
    assert h_n.shape == (n_layers, batch, hidden_size)
    assert c_n.shape == (n_layers, batch, hidden_size)

    y_ref, (h_ref, c_ref) = _reference_forward(
        params, emb_t, h_t_1_tilde, (h_0, c_0))
    assert jnp.allclose(y, y_ref, atol=2e-3, rtol=2e-3)
    assert jnp.allclose(h_n, h_ref, atol=2e-3, rtol=2e-3)
    assert jnp.allclose(c_n, c_ref, atol=2e-3, rtol=2e-3)

    # Also exercise the h_t_1_tilde is None branch.
    y2, _ = decoder_forward(params, emb_t, None, (h_0, c_0), block_n=block_n)
    jax.block_until_ready(y2)
    y2_ref, _ = _reference_forward(params, emb_t, None, (h_0, c_0))
    assert jnp.allclose(y2, y2_ref, atol=2e-3, rtol=2e-3)


if __name__ == "__main__":
    # Lane-dense demo shape (H multiple of 128, B >= 8) — single N tile.
    _run_case(word_vec_size=32, hidden_size=128, n_layers=2, batch=8)
    # Multi-N-tile path (forces block_n=128 < H) exercising the
    # double-buffered carry across column tiles.
    _run_case(word_vec_size=32, hidden_size=256, n_layers=2, batch=8,
              block_n=128, seed=1)
    print("KERNEL_OK")
</pallas_src>

<mosaic_0001>
module attributes {stable_mosaic.version = 11 : i64} {
  func.func @kernel(%arg0: i32, %arg1: i32, %arg2: memref<4x8x128xf32, #tpu.memory_space<vmem>>, %arg3: memref<8x128xf32, #tpu.memory_space<vmem>>, %arg4: memref<1x8x128xf32, #tpu.memory_space<vmem>>, %arg5: memref<1x8x128xf32, #tpu.memory_space<vmem>>, %arg6: memref<1x4x256x128xbf16, #tpu.memory_space<vmem>>, %arg7: memref<1x4x1x128xf32, #tpu.memory_space<vmem>>, %arg8: memref<1x8x128xf32, #tpu.memory_space<vmem>>, %arg9: memref<1x8x128xf32, #tpu.memory_space<vmem>>, %arg10: memref<2x8x256xbf16, #tpu.memory_space<vmem>>) attributes {dimension_semantics = [#tpu.dimension_semantics<arbitrary>, #tpu.dimension_semantics<arbitrary>], iteration_bounds = array<i64: 2, 1>, scalar_prefetch = 0 : i64, scratch_operands = 1 : i64, tpu.core_type = #tpu.core_type<tc>, window_params = [{transform_indices = @transform_0, window_bounds = array<i64: 4, 8, 128>}, {pipeline_mode = #tpu.pipeline_mode<synchronous>, transform_indices = @transform_1, window_bounds = array<i64: 8, 128>}, {transform_indices = @transform_2, window_bounds = array<i64: 1, 8, 128>}, {transform_indices = @transform_3, window_bounds = array<i64: 1, 8, 128>}, {transform_indices = @transform_4, window_bounds = array<i64: 1, 4, 256, 128>}, {transform_indices = @transform_5, window_bounds = array<i64: 1, 4, 1, 128>}, {transform_indices = @transform_6, window_bounds = array<i64: 1, 8, 128>}, {transform_indices = @transform_7, window_bounds = array<i64: 1, 8, 128>}]} {
    %c2_i32 = arith.constant 2 : i32
    %c0_i32 = arith.constant 0 : i32
    %0 = arith.cmpi eq, %c2_i32, %c0_i32 : i32
    %c1_i32 = arith.constant 1 : i32
    %1 = arith.select %0, %c1_i32, %c2_i32 : i32
    %2 = arith.remsi %arg0, %1 : i32
    %c0_i32_0 = arith.constant 0 : i32
    %3 = arith.cmpi ne, %2, %c0_i32_0 : i32
    %c0_i32_1 = arith.constant 0 : i32
    %4 = arith.cmpi slt, %2, %c0_i32_1 : i32
    %c0_i32_2 = arith.constant 0 : i32
    %5 = arith.cmpi slt, %1, %c0_i32_2 : i32
    %6 = arith.xori %4, %5 : i1
    %7 = arith.andi %6, %3 : i1
    %8 = arith.addi %2, %1 : i32
    %9 = arith.select %7, %8, %2 : i32
    %c1_i32_3 = arith.constant 1 : i32
    %10 = arith.addi %arg0, %c1_i32_3 : i32
    %c2_i32_4 = arith.constant 2 : i32
    %c0_i32_5 = arith.constant 0 : i32
    %11 = arith.cmpi eq, %c2_i32_4, %c0_i32_5 : i32
    %c1_i32_6 = arith.constant 1 : i32
    %12 = arith.select %11, %c1_i32_6, %c2_i32_4 : i32
    %13 = arith.remsi %10, %12 : i32
    %c0_i32_7 = arith.constant 0 : i32
    %14 = arith.cmpi ne, %13, %c0_i32_7 : i32
    %c0_i32_8 = arith.constant 0 : i32
    %15 = arith.cmpi slt, %13, %c0_i32_8 : i32
    %c0_i32_9 = arith.constant 0 : i32
    %16 = arith.cmpi slt, %12, %c0_i32_9 : i32
    %17 = arith.xori %15, %16 : i1
    %18 = arith.andi %17, %14 : i1
    %19 = arith.addi %13, %12 : i32
    %20 = arith.select %18, %19, %13 : i32
    %c0_i32_10 = arith.constant 0 : i32
    %21 = arith.cmpi eq, %arg1, %c0_i32_10 : i32
    %22 = arith.extui %21 : i1 to i32
    %c0_i32_11 = arith.constant 0 : i32
    %23 = arith.cmpi ne, %22, %c0_i32_11 : i32
    scf.if %23 {
      %c0_77 = arith.constant 0 : index
      %c0_78 = arith.constant 0 : index
      %c0_79 = arith.constant 0 : index
      %115 = vector.load %arg4[%c0_77, %c0_78, %c0_79] : memref<1x8x128xf32, #tpu.memory_space<vmem>>, vector<1x8x128xf32>
      %116 = vector.shape_cast %115 : vector<1x8x128xf32> to vector<8x128xf32>
      %117 = arith.truncf %116 : vector<8x128xf32> to vector<8x128xbf16>
      %118 = arith.index_cast %9 : i32 to index
      %c0_80 = arith.constant 0 : index
      %c128 = arith.constant 128 : index
      %119 = vector.load %arg10[%118, %c0_80, %c128] : memref<2x8x256xbf16, #tpu.memory_space<vmem>>, vector<1x8x128xbf16>
      %120 = vector.shape_cast %119 : vector<1x8x128xbf16> to vector<8x128xbf16>
      %121 = vector.shape_cast %117 : vector<8x128xbf16> to vector<1x8x128xbf16>
      tpu.vector_store %arg10[%118, %c0_80, %c128], %121 {strides = array<i32>} : memref<2x8x256xbf16, #tpu.memory_space<vmem>>, vector<1x8x128xbf16>,
    } else {
    }
    %c0_i32_12 = arith.constant 0 : i32
    %24 = arith.cmpi eq, %arg0, %c0_i32_12 : i32
    %c0_i32_13 = arith.constant 0 : i32
    %25 = arith.cmpi eq, %arg1, %c0_i32_13 : i32
    %26 = arith.andi %24, %25 : i1
    %27 = arith.extui %26 : i1 to i32
    %c0_i32_14 = arith.constant 0 : i32
    %28 = arith.cmpi ne, %27, %c0_i32_14 : i32
    scf.if %28 {
      %c0_77 = arith.constant 0 : index
      %c0_78 = arith.constant 0 : index
      %115 = vector.load %arg3[%c0_77, %c0_78] : memref<8x128xf32, #tpu.memory_space<vmem>>, vector<8x128xf32>
      %116 = arith.truncf %115 : vector<8x128xf32> to vector<8x128xbf16>
      %c0_79 = arith.constant 0 : index
      %c0_80 = arith.constant 0 : index
      %c0_81 = arith.constant 0 : index
      %117 = vector.load %arg10[%c0_79, %c0_80, %c0_81] : memref<2x8x256xbf16, #tpu.memory_space<vmem>>, vector<1x8x128xbf16>
      %118 = vector.shape_cast %117 : vector<1x8x128xbf16> to vector<8x128xbf16>
      %119 = vector.shape_cast %116 : vector<8x128xbf16> to vector<1x8x128xbf16>
      tpu.vector_store %arg10[%c0_79, %c0_80, %c0_81], %119 {strides = array<i32>} : memref<2x8x256xbf16, #tpu.memory_space<vmem>>, vector<1x8x128xbf16>,
    } else {
    }
    %29 = arith.index_cast %9 : i32 to index
    %c0 = arith.constant 0 : index
    %c0_15 = arith.constant 0 : index
    %30 = vector.load %arg10[%29, %c0, %c0_15] : memref<2x8x256xbf16, #tpu.memory_space<vmem>>, vector<1x8x256xbf16>
    %31 = vector.shape_cast %30 : vector<1x8x256xbf16> to vector<8x256xbf16>
    %c0_16 = arith.constant 0 : index
    %c0_17 = arith.constant 0 : index
    %c0_18 = arith.constant 0 : index
    %32 = vector.load %arg5[%c0_16, %c0_17, %c0_18] : memref<1x8x128xf32, #tpu.memory_space<vmem>>, vector<1x8x128xf32>
    %33 = vector.shape_cast %32 : vector<1x8x128xf32> to vector<8x128xf32>
    %c0_i32_19 = arith.constant 0 : i32
    %34 = arith.cmpi eq, %arg0, %c0_i32_19 : i32
    %cst = arith.constant 1.000000e+00 : f32
    %cst_20 = arith.constant 0.000000e+00 : f32
    %35 = arith.select %34, %cst, %cst_20 : f32
    %c0_21 = arith.constant 0 : index
    %c0_22 = arith.constant 0 : index
    %c0_23 = arith.constant 0 : index
    %c0_24 = arith.constant 0 : index
    %36 = vector.load %arg6[%c0_21, %c0_22, %c0_23, %c0_24] : memref<1x4x256x128xbf16, #tpu.memory_space<vmem>>, vector<1x1x256x128xbf16>
    %37 = vector.shape_cast %36 : vector<1x1x256x128xbf16> to vector<256x128xbf16>
    %cst_25 = arith.constant dense<0.000000e+00> : vector<8x128xf32>
    %38 = tpu.matmul %31, %37, %cst_25 {dimension_numbers = #tpu.dot_dimension_numbers<[1], [0], [0], [1], [0, 0, 1, 1], [], []>} : vector<8x256xbf16>, vector<256x128xbf16>, vector<8x128xf32> -> vector<8x128xf32>
    %c0_26 = arith.constant 0 : index
    %c0_27 = arith.constant 0 : index
    %c0_28 = arith.constant 0 : index
    %c0_29 = arith.constant 0 : index
    %39 = vector.load %arg7[%c0_26, %c0_27, %c0_28, %c0_29] : memref<1x4x1x128xf32, #tpu.memory_space<vmem>>, vector<1x1x1x128xf32>
    %40 = vector.shape_cast %39 : vector<1x1x1x128xf32> to vector<1x128xf32>
    %41 = vector.broadcast %40 : vector<1x128xf32> to vector<8x128xf32>
    %42 = arith.addf %38, %41 : vector<8x128xf32>
    %c0_30 = arith.constant 0 : index
    %c0_31 = arith.constant 0 : index
    %c0_32 = arith.constant 0 : index
    %43 = vector.load %arg2[%c0_30, %c0_31, %c0_32] : memref<4x8x128xf32, #tpu.memory_space<vmem>>, vector<1x8x128xf32>
    %44 = vector.shape_cast %43 : vector<1x8x128xf32> to vector<8x128xf32>
    %45 = vector.broadcast %35 : f32 to vector<8x128xf32>
    %46 = arith.mulf %44, %45 : vector<8x128xf32>
    %47 = arith.addf %42, %46 : vector<8x128xf32>
    %c0_33 = arith.constant 0 : index
    %c1 = arith.constant 1 : index
    %c0_34 = arith.constant 0 : index
    %c0_35 = arith.constant 0 : index
    %48 = vector.load %arg6[%c0_33, %c1, %c0_34, %c0_35] : memref<1x4x256x128xbf16, #tpu.memory_space<vmem>>, vector<1x1x256x128xbf16>
    %49 = vector.shape_cast %48 : vector<1x1x256x128xbf16> to vector<256x128xbf16>
    %cst_36 = arith.constant dense<0.000000e+00> : vector<8x128xf32>
    %50 = tpu.matmul %31, %49, %cst_36 {dimension_numbers = #tpu.dot_dimension_numbers<[1], [0], [0], [1], [0, 0, 1, 1], [], []>} : vector<8x256xbf16>, vector<256x128xbf16>, vector<8x128xf32> -> vector<8x128xf32>
    %c0_37 = arith.constant 0 : index
    %c1_38 = arith.constant 1 : index
    %c0_39 = arith.constant 0 : index
    %c0_40 = arith.constant 0 : index
    %51 = vector.load %arg7[%c0_37, %c1_38, %c0_39, %c0_40] : memref<1x4x1x128xf32, #tpu.memory_space<vmem>>, vector<1x1x1x128xf32>
    %52 = vector.shape_cast %51 : vector<1x1x1x128xf32> to vector<1x128xf32>
    %53 = vector.broadcast %52 : vector<1x128xf32> to vector<8x128xf32>
    %54 = arith.addf %50, %53 : vector<8x128xf32>
    %c1_41 = arith.constant 1 : index
    %c0_42 = arith.constant 0 : index
    %c0_43 = arith.constant 0 : index
    %55 = vector.load %arg2[%c1_41, %c0_42, %c0_43] : memref<4x8x128xf32, #tpu.memory_space<vmem>>, vector<1x8x128xf32>
    %56 = vector.shape_cast %55 : vector<1x8x128xf32> to vector<8x128xf32>
    %57 = vector.broadcast %35 : f32 to vector<8x128xf32>
    %58 = arith.mulf %56, %57 : vector<8x128xf32>
    %59 = arith.addf %54, %58 : vector<8x128xf32>
    %c0_44 = arith.constant 0 : index
    %c2 = arith.constant 2 : index
    %c0_45 = arith.constant 0 : index
    %c0_46 = arith.constant 0 : index
    %60 = vector.load %arg6[%c0_44, %c2, %c0_45, %c0_46] : memref<1x4x256x128xbf16, #tpu.memory_space<vmem>>, vector<1x1x256x128xbf16>
    %61 = vector.shape_cast %60 : vector<1x1x256x128xbf16> to vector<256x128xbf16>
    %cst_47 = arith.constant dense<0.000000e+00> : vector<8x128xf32>
    %62 = tpu.matmul %31, %61, %cst_47 {dimension_numbers = #tpu.dot_dimension_numbers<[1], [0], [0], [1], [0, 0, 1, 1], [], []>} : vector<8x256xbf16>, vector<256x128xbf16>, vector<8x128xf32> -> vector<8x128xf32>
    %c0_48 = arith.constant 0 : index
    %c2_49 = arith.constant 2 : index
    %c0_50 = arith.constant 0 : index
    %c0_51 = arith.constant 0 : index
    %63 = vector.load %arg7[%c0_48, %c2_49, %c0_50, %c0_51] : memref<1x4x1x128xf32, #tpu.memory_space<vmem>>, vector<1x1x1x128xf32>
    %64 = vector.shape_cast %63 : vector<1x1x1x128xf32> to vector<1x128xf32>
    %65 = vector.broadcast %64 : vector<1x128xf32> to vector<8x128xf32>
    %66 = arith.addf %62, %65 : vector<8x128xf32>
    %c2_52 = arith.constant 2 : index
    %c0_53 = arith.constant 0 : index
    %c0_54 = arith.constant 0 : index
    %67 = vector.load %arg2[%c2_52, %c0_53, %c0_54] : memref<4x8x128xf32, #tpu.memory_space<vmem>>, vector<1x8x128xf32>
    %68 = vector.shape_cast %67 : vector<1x8x128xf32> to vector<8x128xf32>
    %69 = vector.broadcast %35 : f32 to vector<8x128xf32>
    %70 = arith.mulf %68, %69 : vector<8x128xf32>
    %71 = arith.addf %66, %70 : vector<8x128xf32>
    %c0_55 = arith.constant 0 : index
    %c3 = arith.constant 3 : index
    %c0_56 = arith.constant 0 : index
    %c0_57 = arith.constant 0 : index
    %72 = vector.load %arg6[%c0_55, %c3, %c0_56, %c0_57] : memref<1x4x256x128xbf16, #tpu.memory_space<vmem>>, vector<1x1x256x128xbf16>
    %73 = vector.shape_cast %72 : vector<1x1x256x128xbf16> to vector<256x128xbf16>
    %cst_58 = arith.constant dense<0.000000e+00> : vector<8x128xf32>
    %74 = tpu.matmul %31, %73, %cst_58 {dimension_numbers = #tpu.dot_dimension_numbers<[1], [0], [0], [1], [0, 0, 1, 1], [], []>} : vector<8x256xbf16>, vector<256x128xbf16>, vector<8x128xf32> -> vector<8x128xf32>
    %c0_59 = arith.constant 0 : index
    %c3_60 = arith.constant 3 : index
    %c0_61 = arith.constant 0 : index
    %c0_62 = arith.constant 0 : index
    %75 = vector.load %arg7[%c0_59, %c3_60, %c0_61, %c0_62] : memref<1x4x1x128xf32, #tpu.memory_space<vmem>>, vector<1x1x1x128xf32>
    %76 = vector.shape_cast %75 : vector<1x1x1x128xf32> to vector<1x128xf32>
    %77 = vector.broadcast %76 : vector<1x128xf32> to vector<8x128xf32>
    %78 = arith.addf %74, %77 : vector<8x128xf32>
    %c3_63 = arith.constant 3 : index
    %c0_64 = arith.constant 0 : index
    %c0_65 = arith.constant 0 : index
    %79 = vector.load %arg2[%c3_63, %c0_64, %c0_65] : memref<4x8x128xf32, #tpu.memory_space<vmem>>, vector<1x8x128xf32>
    %80 = vector.shape_cast %79 : vector<1x8x128xf32> to vector<8x128xf32>
    %81 = vector.broadcast %35 : f32 to vector<8x128xf32>
    %82 = arith.mulf %80, %81 : vector<8x128xf32>
    %83 = arith.addf %78, %82 : vector<8x128xf32>
    %84 = arith.negf %47 : vector<8x128xf32>
    %85 = math.exp %84 : vector<8x128xf32>
    %cst_66 = arith.constant 1.000000e+00 : f32
    %86 = vector.broadcast %cst_66 : f32 to vector<8x128xf32>
    %87 = arith.addf %86, %85 : vector<8x128xf32>
    %88 = arith.divf %86, %87 : vector<8x128xf32>
    %89 = arith.negf %59 : vector<8x128xf32>
    %90 = math.exp %89 : vector<8x128xf32>
    %cst_67 = arith.constant 1.000000e+00 : f32
    %91 = vector.broadcast %cst_67 : f32 to vector<8x128xf32>
    %92 = arith.addf %91, %90 : vector<8x128xf32>
    %93 = arith.divf %91, %92 : vector<8x128xf32>
    %94 = math.tanh %71 : vector<8x128xf32>
    %95 = arith.negf %83 : vector<8x128xf32>
    %96 = math.exp %95 : vector<8x128xf32>
    %cst_68 = arith.constant 1.000000e+00 : f32
    %97 = vector.broadcast %cst_68 : f32 to vector<8x128xf32>
    %98 = arith.addf %97, %96 : vector<8x128xf32>
    %99 = arith.divf %97, %98 : vector<8x128xf32>
    %100 = arith.mulf %93, %33 : vector<8x128xf32>
    %101 = arith.mulf %88, %94 : vector<8x128xf32>
    %102 = arith.addf %100, %101 : vector<8x128xf32>
    %103 = math.tanh %102 : vector<8x128xf32>
    %104 = arith.mulf %99, %103 : vector<8x128xf32>
    %c0_69 = arith.constant 0 : index
    %c0_70 = arith.constant 0 : index
    %c0_71 = arith.constant 0 : index
    %105 = vector.load %arg8[%c0_69, %c0_70, %c0_71] : memref<1x8x128xf32, #tpu.memory_space<vmem>>, vector<1x8x128xf32>
    %106 = vector.shape_cast %105 : vector<1x8x128xf32> to vector<8x128xf32>
    %107 = vector.shape_cast %104 : vector<8x128xf32> to vector<1x8x128xf32>
    tpu.vector_store %arg8[%c0_69, %c0_70, %c0_71], %107 {strides = array<i32>} : memref<1x8x128xf32, #tpu.memory_space<vmem>>, vector<1x8x128xf32>,
    %c0_72 = arith.constant 0 : index
    %c0_73 = arith.constant 0 : index
    %c0_74 = arith.constant 0 : index
    %108 = vector.load %arg9[%c0_72, %c0_73, %c0_74] : memref<1x8x128xf32, #tpu.memory_space<vmem>>, vector<1x8x128xf32>
    %109 = vector.shape_cast %108 : vector<1x8x128xf32> to vector<8x128xf32>
    %110 = vector.shape_cast %102 : vector<8x128xf32> to vector<1x8x128xf32>
    tpu.vector_store %arg9[%c0_72, %c0_73, %c0_74], %110 {strides = array<i32>} : memref<1x8x128xf32, #tpu.memory_space<vmem>>, vector<1x8x128xf32>,
    %111 = arith.truncf %104 : vector<8x128xf32> to vector<8x128xbf16>
    %c0_i32_75 = arith.constant 0 : i32
    %112 = arith.cmpi eq, %arg1, %c0_i32_75 : i32
    %113 = arith.extui %112 : i1 to i32
    %c0_i32_76 = arith.constant 0 : i32
    %114 = arith.cmpi ne, %113, %c0_i32_76 : i32
    scf.if %114 {
      %115 = arith.index_cast %20 : i32 to index
      %c0_77 = arith.constant 0 : index
      %c0_78 = arith.constant 0 : index
      %116 = vector.load %arg10[%115, %c0_77, %c0_78] : memref<2x8x256xbf16, #tpu.memory_space<vmem>>, vector<1x8x128xbf16>
      %117 = vector.shape_cast %116 : vector<1x8x128xbf16> to vector<8x128xbf16>
      %118 = vector.shape_cast %111 : vector<8x128xbf16> to vector<1x8x128xbf16>
      tpu.vector_store %arg10[%115, %c0_77, %c0_78], %118 {strides = array<i32>} : memref<2x8x256xbf16, #tpu.memory_space<vmem>>, vector<1x8x128xbf16>,
    } else {
    }
    return
  }
  func.func @transform_0(%arg0: i32, %arg1: i32) -> (i32, i32, i32) {
    %c0_i32 = arith.constant 0 : i32
    %c0_i32_0 = arith.constant 0 : i32
    %c0_i32_1 = arith.constant 0 : i32
    return %c0_i32, %c0_i32_0, %arg1 : i32, i32, i32
  }
  func.func @transform_1(%arg0: i32, %arg1: i32) -> (i32, i32) {
    %c0_i32 = arith.constant 0 : i32
    %c0_i32_0 = arith.constant 0 : i32
    %c0_i32_1 = arith.constant 0 : i32
    return %c0_i32, %c0_i32_0 : i32, i32
  }
  func.func @transform_2(%arg0: i32, %arg1: i32) -> (i32, i32, i32) {
    %c0_i32 = arith.constant 0 : i32
    %c0_i32_0 = arith.constant 0 : i32
    %c0_i32_1 = arith.constant 0 : i32
    return %arg0, %c0_i32, %c0_i32_0 : i32, i32, i32
  }
  func.func @transform_3(%arg0: i32, %arg1: i32) -> (i32, i32, i32) {
    %c0_i32 = arith.constant 0 : i32
    %c0_i32_0 = arith.constant 0 : i32
    return %arg0, %c0_i32, %arg1 : i32, i32, i32
  }
  func.func @transform_4(%arg0: i32, %arg1: i32) -> (i32, i32, i32, i32) {
    %c0_i32 = arith.constant 0 : i32
    %c0_i32_0 = arith.constant 0 : i32
    %c0_i32_1 = arith.constant 0 : i32
    return %arg0, %c0_i32, %c0_i32_0, %arg1 : i32, i32, i32, i32
  }
  func.func @transform_5(%arg0: i32, %arg1: i32) -> (i32, i32, i32, i32) {
    %c0_i32 = arith.constant 0 : i32
    %c0_i32_0 = arith.constant 0 : i32
    %c0_i32_1 = arith.constant 0 : i32
    return %arg0, %c0_i32, %c0_i32_0, %arg1 : i32, i32, i32, i32
  }
  func.func @transform_6(%arg0: i32, %arg1: i32) -> (i32, i32, i32) {
    %c0_i32 = arith.constant 0 : i32
    %c0_i32_0 = arith.constant 0 : i32
    return %arg0, %c0_i32, %arg1 : i32, i32, i32
  }
  func.func @transform_7(%arg0: i32, %arg1: i32) -> (i32, i32, i32) {
    %c0_i32 = arith.constant 0 : i32
    %c0_i32_0 = arith.constant 0 : i32
    return %arg0, %c0_i32, %arg1 : i32, i32, i32
  }
}

</mosaic_0001>

<llo_original>
// kernel: _decoder_step.1
$region0: #{_decoder_step.1}
  #allocation0 [shape = 'u32[]', space=smem, size = 0x4, offset = 0x4, fixed_abs, tag = 'smem constant byte address 0x4 - core index']
  #allocation1 [shape = 'u32[144,128]{1,0:T(1,128)}', space=vmem, size = 0x12000, scoped, tag = 'internal scratch']
  #allocation2 [shape = 'bf16[2,8,256]{2,1,0:T(8,128)(2,1)}', space=vmem, size = 0x2000, scoped, tag = 'scratch operand']
  %s0 = inlined_call_operand.vmem [shape: f32[4,8,128], index: 0, kind: input, shape index: {}]
  %s1 = inlined_call_operand.vmem [shape: f32[8,128], index: 1, kind: input, shape index: {}]
  %s2 = inlined_call_operand.hbm [shape: f32[2,8,128], index: 2, kind: input, shape index: {}, may-alias: {2,6}]
  %s3 = inlined_call_operand.hbm [shape: f32[2,8,128], index: 3, kind: input, shape index: {}, may-alias: {3,7}]
  %s4 = inlined_call_operand.hbm [shape: bf16[2,4,256,128], index: 4, kind: input, shape index: {}]
  %s5 = inlined_call_operand.vmem [shape: f32[2,4,1,128], index: 5, kind: input, shape index: {}]
  %s6 = inlined_call_operand.hbm [shape: f32[2,8,128], index: 6, kind: output, shape index: {0}, may-alias: {2,6}]
  %s7 = inlined_call_operand.hbm [shape: f32[2,8,128], index: 7, kind: output, shape index: {1}, may-alias: {3,7}]
  %8 = xla_tuple %s6, %s7
  %s9 = sld [smem:[#allocation0]]
  $region89: #{_decoder_step.1} parent=0
    _
  %s11 = ssub.s32 1, %s9
  %s12 = scalar_select 0, %s11, %s9
  $region1: #{_decoder_step.1} parent=0
    #allocation3 [shape = 'u8[8192]{0}', space=vmem, size = 0x2000, scoped, tag = 'input window, operand 2']
    #allocation4 [shape = 's32[2]{0}', space=sflag, size = 0x8, scoped, tag = 'scoped memory for _decoder_step.1']
    #allocation5 [shape = 's32[2]{0}', space=sflag, size = 0x8, scoped, tag = 'scoped memory for _decoder_step.1']
    #allocation6 [shape = 'u8[8192]{0}', space=vmem, size = 0x2000, scoped, tag = 'input window, operand 3']
    #allocation7 [shape = 's32[2]{0}', space=sflag, size = 0x8, scoped, tag = 'scoped memory for _decoder_step.1']
    #allocation8 [shape = 'u8[524288]{0}', space=vmem, size = 0x80000, scoped, tag = 'input window, operand 4']
    #allocation9 [shape = 'u8[8192]{0}', space=vmem, size = 0x2000, scoped, tag = 'output window, operand 0']
    #allocation10 [shape = 'u8[8192]{0}', space=vmem, size = 0x2000, scoped, tag = 'output window, operand 1']
    #allocation11 [shape = 's32[2]{0}', space=sflag, size = 0x8, scoped, tag = 'scoped memory for _decoder_step.1']
    %13 = vsyncpa [#allocation4], 0
    %s14 = scalar_lea.sflag [#allocation4], 1
    %15 = vsyncpa %s14, 0
    %16 = vsyncpa [#allocation7], 0
    %s17 = scalar_lea.sflag [#allocation7], 1
    %18 = vsyncpa %s17, 0
    %19 = vsyncpa [#allocation5], 0
    %s20 = scalar_lea.sflag [#allocation5], 1
    %21 = vsyncpa %s20, 0
    %22 = vsyncpa [#allocation11], 0
    %s23 = scalar_lea.sflag [#allocation11], 1
    %24 = vsyncpa %s23, 0
    loop: start=0, step=1, limit=4
    $region2: #{_decoder_step.1} parent=1 // loop_pre_header
      _
    $region3: #{_decoder_step.1} parent=1 // loop_header
      %s26 = sphi 0, %s30
      %p27 = scmp.ge.s32.totalorder %s26, 4
      %s33 = sphi 0, %s45
      %s34 = sphi 0, %s41
      %s35 = sphi 0, %s33
      %s36 = sphi 0, %s34
      %s37 = sphi 0, %s35
      %s38 = sphi 0, %s36
      %s48 = sphi 0, %s50
      %s51 = sphi 0, %s48
      %s52 = sphi 0, %s51
      %s68 = sphi 0, %s52
      %s72 = sphi 0, %s72
      %s74 = sphi 0, %s72
      %s75 = sphi 0, %s74
      %s89 = sphi 0, %s75
      %s95 = sphi 0, %s97
      %s98 = sphi 0, %s95
      %s99 = sphi 0, %s98
      %s115 = sphi 0, %s99
      %s123 = sphi 0, %s125
      %s126 = sphi 0, %s123
      %s127 = sphi 0, %s126
      %s143 = sphi 0, %s127
      %s151 = sphi 0, %s153
      %s154 = sphi 0, %s151
      %s155 = sphi 0, %s154
      %s171 = sphi 0, %s155
      %s179 = sphi 0, %s181
      %s182 = sphi 0, %s179
      %s183 = sphi 0, %s182
      %s199 = sphi 0, %s183
      %s207 = sphi 0, %s209
      %s210 = sphi 0, %s207
      %s211 = sphi 0, %s210
      %s227 = sphi 0, %s211
      %s235 = sphi 0, %s237
      %s238 = sphi 0, %s235
      %s239 = sphi 0, %s238
      %s255 = sphi 0, %s239
    $region4: #{_decoder_step.1} parent=1 // loop_header_branch
      %29 = sbr.rel (%p27) target = $region8
    $region5: #{_decoder_step.1} parent=1 // loop_body
      %s31 = ssub.s32 %s26, 1
      %s32 = ssub.s32 %s26, 2
      %s39 = sadd.s32 1, %s34
      %p40 = scmp.ge.s32.totalorder %s39, 1
      %s41 = scalar_select %p40, 0, %s39
      %s42 = sadd.s32 1, %s33
      %s43 = scalar_select %p40, %s42, %s33
      %p44 = scmp.ge.s32.totalorder %s43, 2
      %s45 = scalar_select %p44, 0, %s43
      %s46 = ssub.s32 %s34, %s41
      %p47 = scmp.eq.s32.totalorder %s46, 0
      %s49 = sadd.s32 %s48, 1
      %s50 = scalar_select %p47, %s48, %s49
      %p53 = pneg %p47
      %p54 = scmp.eq.s32.totalorder %s26, 1
      %p55 = por %p53, %p54
      %p56 = scmp.ne.s32.totalorder %s48, %s51
      %p57 = scmp.eq.s32.totalorder %s26, 0
      %p58 = por %p56, %p57
      %p59 = scmp.ne.s32.totalorder %s48, %s51
      %p60 = scmp.eq.s32.totalorder %s31, 1
      %p61 = por %p59, %p60
      %p62 = scmp.ne.s32.totalorder %s51, %s52
      %p63 = scmp.eq.s32.totalorder %s31, 0
      %p64 = por %p62, %p63
      %p65 = scmp.ne.s32.totalorder %s51, %s52
      %p66 = scmp.eq.s32.totalorder %s32, 1
      %p67 = por %p65, %p66
      %p69 = scmp.ne.s32.totalorder %s52, %s68
      %p70 = scmp.eq.s32.totalorder %s32, 0
      %p71 = por %p69, %p70
      %s73 = sadd.s32 %s72, 1
      %p76 = scmp.eq.s32.totalorder %s26, 1
      %p77 = scmp.ne.s32.totalorder %s72, %s74
      %p78 = scmp.eq.s32.totalorder %s26, 0
      %p79 = por %p77, %p78
      %p80 = scmp.ne.s32.totalorder %s72, %s74
      %p81 = scmp.eq.s32.totalorder %s31, 1
      %p82 = por %p80, %p81
      %p83 = scmp.ne.s32.totalorder %s74, %s75
      %p84 = scmp.eq.s32.totalorder %s31, 0
      %p85 = por %p83, %p84
      %p86 = scmp.ne.s32.totalorder %s74, %s75
      %p87 = scmp.eq.s32.totalorder %s32, 1
      %p88 = por %p86, %p87
      %p90 = scmp.ne.s32.totalorder %s75, %s89
      %p91 = scmp.eq.s32.totalorder %s32, 0
      %p92 = por %p90, %p91
      %s93 = ssub.s32 %s33, %s45
      %p94 = scmp.eq.s32.totalorder %s93, 0
      %s96 = sadd.s32 %s95, 1
      %s97 = scalar_select %p94, %s95, %s96
      %p100 = pneg %p94
      %p101 = scmp.eq.s32.totalorder %s26, 1
      %p102 = por %p100, %p101
      %p103 = scmp.ne.s32.totalorder %s95, %s98
      %p104 = scmp.eq.s32.totalorder %s26, 0
      %p105 = por %p103, %p104
      %p106 = scmp.ne.s32.totalorder %s95, %s98
      %p107 = scmp.eq.s32.totalorder %s31, 1
      %p108 = por %p106, %p107
      %p109 = scmp.ne.s32.totalorder %s98, %s99
      %p110 = scmp.eq.s32.totalorder %s31, 0
      %p111 = por %p109, %p110
      %p112 = scmp.ne.s32.totalorder %s98, %s99
      %p113 = scmp.eq.s32.totalorder %s32, 1
      %p114 = por %p112, %p113
      %p116 = scmp.ne.s32.totalorder %s99, %s115
      %p117 = scmp.eq.s32.totalorder %s32, 0
      %p118 = por %p116, %p117
      %s119 = ssub.s32 %s33, %s45
      %s120 = ssub.s32 %s34, %s41
      %s121 = sor.u32 %s119, %s120
      %p122 = scmp.eq.s32.totalorder %s121, 0
      %s124 = sadd.s32 %s123, 1
      %s125 = scalar_select %p122, %s123, %s124
      %p128 = pneg %p122
      %p129 = scmp.eq.s32.totalorder %s26, 1
      %p130 = por %p128, %p129
      %p131 = scmp.ne.s32.totalorder %s123, %s126
      %p132 = scmp.eq.s32.totalorder %s26, 0
      %p133 = por %p131, %p132
      %p134 = scmp.ne.s32.totalorder %s123, %s126
      %p135 = scmp.eq.s32.totalorder %s31, 1
      %p136 = por %p134, %p135
      %p137 = scmp.ne.s32.totalorder %s126, %s127
      %p138 = scmp.eq.s32.totalorder %s31, 0
      %p139 = por %p137, %p138
      %p140 = scmp.ne.s32.totalorder %s126, %s127
      %p141 = scmp.eq.s32.totalorder %s32, 1
      %p142 = por %p140, %p141
      %p144 = scmp.ne.s32.totalorder %s127, %s143
      %p145 = scmp.eq.s32.totalorder %s32, 0
      %p146 = por %p144, %p145
      %s147 = ssub.s32 %s33, %s45
      %s148 = ssub.s32 %s34, %s41
      %s149 = sor.u32 %s147, %s148
      %p150 = scmp.eq.s32.totalorder %s149, 0
      %s152 = sadd.s32 %s151, 1
      %s153 = scalar_select %p150, %s151, %s152
      %p156 = pneg %p150
      %p157 = scmp.eq.s32.totalorder %s26, 1
      %p158 = por %p156, %p157
      %p159 = scmp.ne.s32.totalorder %s151, %s154
      %p160 = scmp.eq.s32.totalorder %s26, 0
      %p161 = por %p159, %p160
      %p162 = scmp.ne.s32.totalorder %s151, %s154
      %p163 = scmp.eq.s32.totalorder %s31, 1
      %p164 = por %p162, %p163
      %p165 = scmp.ne.s32.totalorder %s154, %s155
      %p166 = scmp.eq.s32.totalorder %s31, 0
      %p167 = por %p165, %p166
      %p168 = scmp.ne.s32.totalorder %s154, %s155
      %p169 = scmp.eq.s32.totalorder %s32, 1
      %p170 = por %p168, %p169
      %p172 = scmp.ne.s32.totalorder %s155, %s171
      %p173 = scmp.eq.s32.totalorder %s32, 0
      %p174 = por %p172, %p173
      %s175 = ssub.s32 %s33, %s45
      %s176 = ssub.s32 %s34, %s41
      %s177 = sor.u32 %s175, %s176
      %p178 = scmp.eq.s32.totalorder %s177, 0
      %s180 = sadd.s32 %s179, 1
      %s181 = scalar_select %p178, %s179, %s180
      %p184 = pneg %p178
      %p185 = scmp.eq.s32.totalorder %s26, 1
      %p186 = por %p184, %p185
      %p187 = scmp.ne.s32.totalorder %s179, %s182
      %p188 = scmp.eq.s32.totalorder %s26, 0
      %p189 = por %p187, %p188
      %p190 = scmp.ne.s32.totalorder %s179, %s182
      %p191 = scmp.eq.s32.totalorder %s31, 1
      %p192 = por %p190, %p191
      %p193 = scmp.ne.s32.totalorder %s182, %s183
      %p194 = scmp.eq.s32.totalorder %s31, 0
      %p195 = por %p193, %p194
      %p196 = scmp.ne.s32.totalorder %s182, %s183
      %p197 = scmp.eq.s32.totalorder %s32, 1
      %p198 = por %p196, %p197
      %p200 = scmp.ne.s32.totalorder %s183, %s199
      %p201 = scmp.eq.s32.totalorder %s32, 0
      %p202 = por %p200, %p201
      %s203 = ssub.s32 %s33, %s45
      %s204 = ssub.s32 %s34, %s41
      %s205 = sor.u32 %s203, %s204
      %p206 = scmp.eq.s32.totalorder %s205, 0
      %s208 = sadd.s32 %s207, 1
      %s209 = scalar_select %p206, %s207, %s208
      %p212 = pneg %p206
      %p213 = scmp.eq.s32.totalorder %s26, 1
      %p214 = por %p212, %p213
      %p215 = scmp.ne.s32.totalorder %s207, %s210
      %p216 = scmp.eq.s32.totalorder %s26, 0
      %p217 = por %p215, %p216
      %p218 = scmp.ne.s32.totalorder %s207, %s210
      %p219 = scmp.eq.s32.totalorder %s31, 1
      %p220 = por %p218, %p219
      %p221 = scmp.ne.s32.totalorder %s210, %s211
      %p222 = scmp.eq.s32.totalorder %s31, 0
      %p223 = por %p221, %p222
      %p224 = scmp.ne.s32.totalorder %s210, %s211
      %p225 = scmp.eq.s32.totalorder %s32, 1
      %p226 = por %p224, %p225
      %p228 = scmp.ne.s32.totalorder %s211, %s227
      %p229 = scmp.eq.s32.totalorder %s32, 0
      %p230 = por %p228, %p229
      %s231 = ssub.s32 %s33, %s45
      %s232 = ssub.s32 %s34, %s41
      %s233 = sor.u32 %s231, %s232
      %p234 = scmp.eq.s32.totalorder %s233, 0
      %s236 = sadd.s32 %s235, 1
      %s237 = scalar_select %p234, %s235, %s236
      %p240 = pneg %p234
      %p241 = scmp.eq.s32.totalorder %s26, 1
      %p242 = por %p240, %p241
      %p243 = scmp.ne.s32.totalorder %s235, %s238
      %p244 = scmp.eq.s32.totalorder %s26, 0
      %p245 = por %p243, %p244
      %p246 = scmp.ne.s32.totalorder %s235, %s238
      %p247 = scmp.eq.s32.totalorder %s31, 1
      %p248 = por %p246, %p247
      %p249 = scmp.ne.s32.totalorder %s238, %s239
      %p250 = scmp.eq.s32.totalorder %s31, 0
      %p251 = por %p249, %p250
      %p252 = scmp.ne.s32.totalorder %s238, %s239
      %p253 = scmp.eq.s32.totalorder %s32, 1
      %p254 = por %p252, %p253
      %p256 = scmp.ne.s32.totalorder %s239, %s255
      %p257 = scmp.eq.s32.totalorder %s32, 0
      %p258 = por %p256, %p257
      %p259 = scmp.le.s32.totalorder 1, %s26
      %p260 = scmp.lt.s32.totalorder %s26, 3
      %p261 = pnand %p259, %p260
      %p262 = pneg %p261
      // Predicated region
      $region9: #{_decoder_step.1} parent=5 // pred_check
        _
      $region10: #{_decoder_step.1} parent=5 // pred_check_branch
        %264 = sbr.rel (%p261) target = $region12
      $region11: #{_decoder_step.1} parent=5 // pred_region
        %s265 = ssub.s32 %s26, 1
        // Predicated region
        $region13: #{_decoder_step.1} parent=11 // pred_check
          %p266 = pneg %p64
        $region14: #{_decoder_step.1} parent=11 // pred_check_branch
          %268 = sbr.rel (%p266) target = $region16
        $region15: #{_decoder_step.1} parent=11 // pred_region
          %p269 = scmp.lt.s32.totalorder %s36, 0
          %s270 = scalar_select %p269, %s36, 0
          %s271 = smul.addr %s270, 8
          %s272 = scalar_lea.vmem %s0, %s271
        $region16: #{_decoder_step.1} parent=11 // pred_fallthru
          _
        // Predicated region
        $region17: #{_decoder_step.1} parent=11 // pred_check
          %p273 = pneg %p85
        $region18: #{_decoder_step.1} parent=11 // pred_check_branch
          %275 = sbr.rel (%p273) target = $region20
        $region19: #{_decoder_step.1} parent=11 // pred_region
          _
        $region20: #{_decoder_step.1} parent=11 // pred_fallthru
          _
      $region12: #{_decoder_step.1} parent=5 // pred_fallthru
        _
      %p276 = scmp.lt.s32.totalorder %s26, 2
      // Predicated region
      $region21: #{_decoder_step.1} parent=5 // pred_check
        %p277 = pneg %p276
      $region22: #{_decoder_step.1} parent=5 // pred_check_branch
        %279 = sbr.rel (%p277) target = $region24
      $region23: #{_decoder_step.1} parent=5 // pred_region
        // Predicated region
        $region25: #{_decoder_step.1} parent=23 // pred_check
          %p280 = pneg %p105
        $region26: #{_decoder_step.1} parent=23 // pred_check_branch
          %282 = sbr.rel (%p280) target = $region28
        $region27: #{_decoder_step.1} parent=23 // pred_region
          %s283 = sand.u32 %s95, 1
          %s284 = scalar_lea.sflag [#allocation4], %s283
          %s285 = sand.u32 %s95, 1
          %s286 = smul.addr %s285, 8
          %s287 = scalar_lea.vmem [#allocation3], %s286
          %s289 = ssub.s32 128, 128
          %290 = vsyncadd %s284, %s289
          %s291 = smul.addr %s33, 128
          %s292 = scalar_lea.hbm %s2, %s291
          %s294 = sshll.u32 %s287, 4
          %s295 = int_to_ptr.vmem [resolvable:$true] %s294
          %297 = dma.hbm_to_vmem [thread:$0]  %s292, 128, %s295, %s284
        $region28: #{_decoder_step.1} parent=23 // pred_fallthru
          _
        // Predicated region
        $region29: #{_decoder_step.1} parent=23 // pred_check
          %p298 = pneg %p133
        $region30: #{_decoder_step.1} parent=23 // pred_check_branch
          %300 = sbr.rel (%p298) target = $region32
        $region31: #{_decoder_step.1} parent=23 // pred_region
          %s301 = sand.u32 %s26, 1
          %s302 = scalar_lea.sflag [#allocation7], %s301
          %s303 = sand.u32 %s123, 1
          %s304 = smul.addr %s303, 8
          %s305 = scalar_lea.vmem [#allocation6], %s304
          %s307 = ssub.s32 128, 128
          %308 = vsyncadd %s302, %s307
          %s309 = sadd.s32 %s34, %s33
          %s310 = smul.addr %s309, 128
          %s311 = scalar_lea.hbm %s3, %s310
          %s313 = sshll.u32 %s305, 4
          %s314 = int_to_ptr.vmem [resolvable:$true] %s313
          %316 = dma.hbm_to_vmem [thread:$0]  %s311, 128, %s314, %s302
        $region32: #{_decoder_step.1} parent=23 // pred_fallthru
          _
        // Predicated region
        $region33: #{_decoder_step.1} parent=23 // pred_check
          %p317 = pneg %p161
        $region34: #{_decoder_step.1} parent=23 // pred_check_branch
          %319 = sbr.rel (%p317) target = $region36
        $region35: #{_decoder_step.1} parent=23 // pred_region
          %s320 = sand.u32 %s26, 1
          %s321 = scalar_lea.sflag [#allocation7], %s320
          %s322 = sand.u32 %s151, 1
          %s323 = smul.addr %s322, 512
          %s324 = scalar_lea.vmem [#allocation8], %s323
          %s326 = ssub.s32 8192, 8192
          %327 = vsyncadd %s321, %s326
          %s328 = smul.addr %s33, 128
          %s329 = sadd.s32 %s34, %s328
          %s330 = smul.addr %s329, 64
          %s331 = scalar_lea.hbm %s4, %s330
          %s332 = sshll.u32 %s324, 4
          %s333 = int_to_ptr.vmem [resolvable:$true] %s332
          %338 = dma.hbm_to_vmem [thread:$0]  %s331, 8192, %s333, %s321, 64, 64, 4
        $region36: #{_decoder_step.1} parent=23 // pred_fallthru
          _
        // Predicated region
        $region37: #{_decoder_step.1} parent=23 // pred_check
          %p339 = pneg %p189
        $region38: #{_decoder_step.1} parent=23 // pred_check_branch
          %341 = sbr.rel (%p339) target = $region40
        $region39: #{_decoder_step.1} parent=23 // pred_region
          %p342 = scmp.lt.s32.totalorder %s33, 1
          %s343 = scalar_select %p342, %s33, 1
          %p344 = scmp.lt.s32.totalorder %s34, 0
          %s345 = scalar_select %p344, %s34, 0
          %s346 = smul.addr %s343, 4
          %s347 = sadd.s32 %s345, %s346
          %s348 = scalar_lea.vmem %s5, %s347
        $region40: #{_decoder_step.1} parent=23 // pred_fallthru
          _
      $region24: #{_decoder_step.1} parent=5 // pred_fallthru
        _
      %p349 = scmp.le.s32.totalorder 1, %s26
      %p350 = scmp.lt.s32.totalorder %s26, 3
      %p351 = pnand %p349, %p350
      %p352 = pneg %p351
      // Predicated region
      $region41: #{_decoder_step.1} parent=5 // pred_check
        _
      $region42: #{_decoder_step.1} parent=5 // pred_check_branch
        %354 = sbr.rel (%p351) target = $region44
      $region43: #{_decoder_step.1} parent=5 // pred_region
        %s355 = ssub.s32 %s26, 1
        %s356 = sand.u32 %s98, 1
        %s357 = scalar_lea.sflag [#allocation4], %s356
        %s358 = sand.u32 %s98, 1
        %s359 = smul.addr %s358, 8
        %s360 = scalar_lea.vmem [#allocation3], %s359
        // Predicated region
        $region45: #{_decoder_step.1} parent=43 // pred_check
          %p361 = pneg %p111
        $region46: #{_decoder_step.1} parent=43 // pred_check_branch
          %363 = sbr.rel (%p361) target = $region48
        $region47: #{_decoder_step.1} parent=43 // pred_region
          %364 = dma.done %s357, 128
        $region48: #{_decoder_step.1} parent=43 // pred_fallthru
          _
        %s365 = sand.u32 %s31, 1
        %s366 = scalar_lea.sflag [#allocation7], %s365
        %s367 = sand.u32 %s126, 1
        %s368 = smul.addr %s367, 8
        %s369 = scalar_lea.vmem [#allocation6], %s368
        // Predicated region
        $region49: #{_decoder_step.1} parent=43 // pred_check
          %p370 = pneg %p139
        $region50: #{_decoder_step.1} parent=43 // pred_check_branch
          %372 = sbr.rel (%p370) target = $region52
        $region51: #{_decoder_step.1} parent=43 // pred_region
          %373 = dma.done %s366, 128
        $region52: #{_decoder_step.1} parent=43 // pred_fallthru
          _
        %s374 = sand.u32 %s31, 1
        %s375 = scalar_lea.sflag [#allocation7], %s374
        %s376 = sand.u32 %s154, 1
        %s377 = smul.addr %s376, 512
        %s378 = scalar_lea.vmem [#allocation8], %s377
        // Predicated region
        $region53: #{_decoder_step.1} parent=43 // pred_check
          %p379 = pneg %p167
        $region54: #{_decoder_step.1} parent=43 // pred_check_branch
          %381 = sbr.rel (%p379) target = $region56
        $region55: #{_decoder_step.1} parent=43 // pred_region
          %382 = dma.done %s375, 8192
        $region56: #{_decoder_step.1} parent=43 // pred_fallthru
          _
        %p383 = scmp.lt.s32.totalorder %s36, 0
        %s384 = scalar_select %p383, %s36, 0
        %s385 = smul.addr %s384, 8
        %s386 = scalar_lea.vmem %s0, %s385
        %p387 = pneg %p64
        %p388 = pneg %p61
        %p389 = pneg %p85
        %p390 = pneg %p82
        %s391 = sand.u32 %s98, 1
        %s392 = scalar_lea.sflag [#allocation4], %s391
        %s393 = sand.u32 %s98, 1
        %s394 = smul.addr %s393, 8
        %s395 = scalar_lea.vmem [#allocation3], %s394
        %p396 = pneg %p111
        %p397 = pneg %p108
        %s398 = sand.u32 %s31, 1
        %s399 = scalar_lea.sflag [#allocation7], %s398
        %s400 = sand.u32 %s126, 1
        %s401 = smul.addr %s400, 8
        %s402 = scalar_lea.vmem [#allocation6], %s401
        %p403 = pneg %p139
        %p404 = pneg %p136
        %s405 = sand.u32 %s31, 1
        %s406 = scalar_lea.sflag [#allocation7], %s405
        %s407 = sand.u32 %s154, 1
        %s408 = smul.addr %s407, 512
        %s409 = scalar_lea.vmem [#allocation8], %s408
        %p410 = pneg %p167
        %p411 = pneg %p164
        %p412 = scmp.lt.s32.totalorder %s35, 1
        %s413 = scalar_select %p412, %s35, 1
        %p414 = scmp.lt.s32.totalorder %s36, 0
        %s415 = scalar_select %p414, %s36, 0
        %s416 = smul.addr %s413, 4
        %s417 = sadd.s32 %s415, %s416
        %s418 = scalar_lea.vmem %s5, %s417
        %p419 = pneg %p195
        %p420 = pneg %p192
        %p421 = pneg %p223
        %p422 = pneg %p220
        %s423 = sand.u32 %s210, 1
        %s424 = scalar_lea.sflag [#allocation5], %s423
        %s425 = sand.u32 %s210, 1
        %s426 = smul.addr %s425, 8
        %s427 = scalar_lea.vmem [#allocation9], %s426
        %p428 = pneg %p251
        %p429 = pneg %p248
        %s430 = sand.u32 %s238, 1
        %s431 = scalar_lea.sflag [#allocation11], %s430
        %s432 = sand.u32 %s238, 1
        %s433 = smul.addr %s432, 8
        %s434 = scalar_lea.vmem [#allocation10], %s433
        %p435 = scmp.lt.s32.totalorder %s36, 0
        %s436 = scalar_select %p435, %s36, 0
        %s437 = smul.addr %s436, 8
        %s438 = scalar_lea.vmem %s0, %s437
        %p439 = scmp.lt.s32.totalorder %s35, 1
        %s440 = scalar_select %p439, %s35, 1
        %p441 = scmp.lt.s32.totalorder %s36, 0
        %s442 = scalar_select %p441, %s36, 0
        %s443 = smul.addr %s440, 4
        %s444 = sadd.s32 %s442, %s443
        %s445 = scalar_lea.vmem %s5, %s444
        %p447 = scmp.lt.s32.totalorder %s35, 0
        %s448 = ssub.s32 0, %s35
        %s449 = scalar_select %p447, %s448, %s35
        %s450 = sand.u32 %s449, 1
        %s451 = ssub.s32 0, %s450
        %s452 = scalar_select %p447, %s451, %s450
        %p453 = scmp.ne.s32.totalorder %s452, 0
        %p454 = scmp.lt.s32.totalorder %s452, 0
        %p455 = pnand %p454, %p453
        %p456 = pneg %p455
        %s457 = sadd.s32 %s452, 2
        %s458 = scalar_select %p456, %s457, %s452
        %s459 = sadd.s32 %s35, 1
        %p460 = scmp.lt.s32.totalorder %s459, 0
        %s461 = ssub.s32 0, %s459
        %s462 = scalar_select %p460, %s461, %s459
        %s463 = sand.u32 %s462, 1
        %s464 = ssub.s32 0, %s463
        %s465 = scalar_select %p460, %s464, %s463
        %p466 = scmp.ne.s32.totalorder %s465, 0
        %p467 = scmp.lt.s32.totalorder %s465, 0
        %p468 = pnand %p467, %p466
        %p469 = pneg %p468
        %s470 = sadd.s32 %s465, 2
        %s471 = scalar_select %p469, %s470, %s465
        %p472 = scmp.eq.s32.totalorder %s36, 0
        // Predicated region
        $region57: #{_decoder_step.1} parent=43 // pred_check
          %p473 = pneg %p472
        $region58: #{_decoder_step.1} parent=43 // pred_check_branch
          %475 = sbr.rel (%p473) target = $region60
        $region59: #{_decoder_step.1} parent=43 // pred_region
          %v476 = vld [vmem:[%s360] sm:$0xff]
          %v477 = vpack.c.bf16 %v476, %v476
          %s478 = smul.u32 %s458, 2
          %s479 = smul.addr %s478, 4
          %s480 = scalar_lea.vmem [#allocation2], %s479
          %481 = vst [vmem:[%s480 + $0x4] sm:$0xf] %v477
        $region60: #{_decoder_step.1} parent=43 // pred_fallthru
          _
        %p482 = scmp.eq.s32.totalorder %s35, 0
        %p483 = pnand %p482, %p472
        %p484 = pneg %p483
        // Predicated region
        $region61: #{_decoder_step.1} parent=43 // pred_check
          _
        $region62: #{_decoder_step.1} parent=43 // pred_check_branch
          %486 = sbr.rel (%p483) target = $region64
        $region63: #{_decoder_step.1} parent=43 // pred_region
          %v487 = vld [vmem:[%s1] sm:$0xff]
          %v488 = vpack.c.bf16 %v487, %v487
          %489 = vst [vmem:[#allocation2] sm:$0xf] %v488
        $region64: #{_decoder_step.1} parent=43 // pred_fallthru
          _
        %s490 = smul.u32 %s458, 2
        %s491 = smul.addr %s490, 4
        %s492 = scalar_lea.vmem [#allocation2], %s491
        %v493 = vld [vmem:[%s492] sm:$0xff]
        %v494 = vld [vmem:[%s369] sm:$0xff]
        %s495 = scalar_select %p482, 1.0, 0.0
        %v496 = vld [vmem:[%s378] sm:$0xf]
        %v497 = vld [vmem:[%s378 + $0x4] sm:$0xf]
        %v498 = vld [vmem:[%s378 + $0x8] sm:$0xf]
        %v499 = vld [vmem:[%s378 + $0xc] sm:$0xf]
        %v500 = vld [vmem:[%s378 + $0x10] sm:$0xf]
        %v501 = vld [vmem:[%s378 + $0x14] sm:$0xf]
        %v502 = vld [vmem:[%s378 + $0x18] sm:$0xf]
        %v503 = vld [vmem:[%s378 + $0x1c] sm:$0xf]
        %v504 = vld [vmem:[%s378 + $0x20] sm:$0xf]
        %v505 = vld [vmem:[%s378 + $0x24] sm:$0xf]
        %v506 = vld [vmem:[%s378 + $0x28] sm:$0xf]
        %v507 = vld [vmem:[%s378 + $0x2c] sm:$0xf]
        %v508 = vld [vmem:[%s378 + $0x30] sm:$0xf]
        %v509 = vld [vmem:[%s378 + $0x34] sm:$0xf]
        %v510 = vld [vmem:[%s378 + $0x38] sm:$0xf]
        %v511 = vld [vmem:[%s378 + $0x3c] sm:$0xf]
        %v512 = vld [vmem:[%s378 + $0x40] sm:$0xf]
        %v513 = vld [vmem:[%s378 + $0x44] sm:$0xf]
        %v514 = vld [vmem:[%s378 + $0x48] sm:$0xf]
        %v515 = vld [vmem:[%s378 + $0x4c] sm:$0xf]
        %v516 = vld [vmem:[%s378 + $0x50] sm:$0xf]
        %v517 = vld [vmem:[%s378 + $0x54] sm:$0xf]
        %v518 = vld [vmem:[%s378 + $0x58] sm:$0xf]
        %v519 = vld [vmem:[%s378 + $0x5c] sm:$0xf]
        %v520 = vld [vmem:[%s378 + $0x60] sm:$0xf]
        %v521 = vld [vmem:[%s378 + $0x64] sm:$0xf]
        %v522 = vld [vmem:[%s378 + $0x68] sm:$0xf]
        %v523 = vld [vmem:[%s378 + $0x6c] sm:$0xf]
        %v524 = vld [vmem:[%s378 + $0x70] sm:$0xf]
        %v525 = vld [vmem:[%s378 + $0x74] sm:$0xf]
        %v526 = vld [vmem:[%s378 + $0x78] sm:$0xf]
        %v527 = vld [vmem:[%s378 + $0x7c] sm:$0xf]
        %v528 = vld [vmem:[%s445] sm:$0x1]
        %v530 = vlaneseq
        %v531 = vshrl.u32 %v530, 7
        %v532 = vsub.s32 0, %v531
        %v533 = vrot.slane %v528, %v532
        %v536 = vunpack.c.l.b16 %v493
        %v537 = vunpack.c.h.b16 %v493
        %v538 = vpack.c.b16 %v536, %v536
        %v539 = vpack.c.b16 %v537, %v537
        %v574 = vunpack.c.l.b16 %v496
        %v575 = vunpack.c.l.b16 %v497
        %v576 = vunpack.c.l.b16 %v498
        %v577 = vunpack.c.l.b16 %v499
        %v578 = vunpack.c.l.b16 %v500
        %v579 = vunpack.c.l.b16 %v501
        %v580 = vunpack.c.l.b16 %v502
        %v581 = vunpack.c.l.b16 %v503
        %v582 = vunpack.c.l.b16 %v504
        %v583 = vunpack.c.l.b16 %v505
        %v584 = vunpack.c.l.b16 %v506
        %v585 = vunpack.c.l.b16 %v507
        %v586 = vunpack.c.l.b16 %v508
        %v587 = vunpack.c.l.b16 %v509
        %v588 = vunpack.c.l.b16 %v510
        %v589 = vunpack.c.l.b16 %v511
        %v590 = vunpack.c.l.b16 %v512
        %v591 = vunpack.c.l.b16 %v513
        %v592 = vunpack.c.l.b16 %v514
        %v593 = vunpack.c.l.b16 %v515
        %v594 = vunpack.c.l.b16 %v516
        %v595 = vunpack.c.l.b16 %v517
        %v596 = vunpack.c.l.b16 %v518
        %v597 = vunpack.c.l.b16 %v519
        %v598 = vunpack.c.l.b16 %v520
        %v599 = vunpack.c.l.b16 %v521
        %v600 = vunpack.c.l.b16 %v522
        %v601 = vunpack.c.l.b16 %v523
        %v602 = vunpack.c.l.b16 %v524
        %v603 = vunpack.c.l.b16 %v525
        %v604 = vunpack.c.l.b16 %v526
        %v605 = vunpack.c.l.b16 %v527
        %v606 = vpack.c.b16 %v575, %v574
        %v607 = vpack.c.b16 %v577, %v576
        %v608 = vpack.c.b16 %v579, %v578
        %v609 = vpack.c.b16 %v581, %v580
        %v610 = vpack.c.b16 %v583, %v582
        %v611 = vpack.c.b16 %v585, %v584
        %v612 = vpack.c.b16 %v587, %v586
        %v613 = vpack.c.b16 %v589, %v588
        %v614 = vpack.c.b16 %v591, %v590
        %v615 = vpack.c.b16 %v593, %v592
        %v616 = vpack.c.b16 %v595, %v594
        %v617 = vpack.c.b16 %v597, %v596
        %v618 = vpack.c.b16 %v599, %v598
        %v619 = vpack.c.b16 %v601, %v600
        %v620 = vpack.c.b16 %v603, %v602
        %v621 = vpack.c.b16 %v605, %v604
        %638 = vmatprep.subr.bf16.mxu0 0
        %639 = vmatpush1.bf16.msra.mxu0 %v613
        %640 = vmatprep.subr.bf16.mxu0 0
        %641 = vmatpush1.bf16.msra.mxu0 %v612
        %642 = vmatprep.subr.bf16.mxu0 0
        %643 = vmatpush1.bf16.msra.mxu0 %v611
        %644 = vmatprep.subr.bf16.mxu0 0
        %645 = vmatpush1.bf16.msra.mxu0 %v610
        %646 = vmatprep.subr.bf16.mxu0 0
        %647 = vmatpush1.bf16.msra.mxu0 %v609
        %648 = vmatprep.subr.bf16.mxu0 0
        %649 = vmatpush1.bf16.msra.mxu0 %v608
        %650 = vmatprep.subr.bf16.mxu0 0
        %651 = vmatpush1.bf16.msra.mxu0 %v607
        %652 = vmatprep.subr.bf16.mxu0 0
        %653 = vmatpush1.bf16.msra.mxu0 %v606
        %654 = vmatprep.subr.bf16.mxu0 0
        %655 = vmatpush2.bf16.msra.mxu0 %v621
        %656 = vmatprep.subr.bf16.mxu0 0
        %657 = vmatpush2.bf16.msra.mxu0 %v620
        %658 = vmatprep.subr.bf16.mxu0 0
        %659 = vmatpush2.bf16.msra.mxu0 %v619
        %660 = vmatprep.subr.bf16.mxu0 0
        %661 = vmatpush2.bf16.msra.mxu0 %v618
        %662 = vmatprep.subr.bf16.mxu0 0
        %663 = vmatpush2.bf16.msra.mxu0 %v617
        %664 = vmatprep.subr.bf16.mxu0 0
        %665 = vmatpush2.bf16.msra.mxu0 %v616
        %666 = vmatprep.subr.bf16.mxu0 0
        %667 = vmatpush2.bf16.msra.mxu0 %v615
        %668 = vmatprep.subr.bf16.mxu0 0
        %669 = vmatpush2.bf16.msra.mxu0 %v614
        %670 = vmatprep.mubr.bf16.mxu0 %v539
        %671 = vmatmul.mubr.bf16.gmra.mxu0 %v538
        %v672 = vpop.f32.mrf.mxu0
        %v673 = vadd.f32 %v533, %v672
        %v674 = vpop.f32.mrf.mxu0
        %v675 = vpop.f32.mrf.mxu0
        %v676 = vpop.f32.mrf.mxu0
        %677 = vdwg.mxu0
        %v678 = vld [vmem:[%s438] sm:$0xff]
        %v679 = vstv %s495
        %v680 = vmul.f32 %v678, %v679
        %v681 = vadd.f32 %v673, %v680
        %s682 = scalar_lea.vmem %s378, 128 [#allocation8]
        %v683 = vld [vmem:[%s682] sm:$0xf]
        %v684 = vld [vmem:[%s682 + $0x4] sm:$0xf]
        %v685 = vld [vmem:[%s682 + $0x8] sm:$0xf]
        %v686 = vld [vmem:[%s682 + $0xc] sm:$0xf]
        %v687 = vld [vmem:[%s682 + $0x10] sm:$0xf]
        %v688 = vld [vmem:[%s682 + $0x14] sm:$0xf]
        %v689 = vld [vmem:[%s682 + $0x18] sm:$0xf]
        %v690 = vld [vmem:[%s682 + $0x1c] sm:$0xf]
        %v691 = vld [vmem:[%s682 + $0x20] sm:$0xf]
        %v692 = vld [vmem:[%s682 + $0x24] sm:$0xf]
        %v693 = vld [vmem:[%s682 + $0x28] sm:$0xf]
        %v694 = vld [vmem:[%s682 + $0x2c] sm:$0xf]
        %v695 = vld [vmem:[%s682 + $0x30] sm:$0xf]
        %v696 = vld [vmem:[%s682 + $0x34] sm:$0xf]
        %v697 = vld [vmem:[%s682 + $0x38] sm:$0xf]
        %v698 = vld [vmem:[%s682 + $0x3c] sm:$0xf]
        %v699 = vld [vmem:[%s682 + $0x40] sm:$0xf]
        %v700 = vld [vmem:[%s682 + $0x44] sm:$0xf]
        %v701 = vld [vmem:[%s682 + $0x48] sm:$0xf]
        %v702 = vld [vmem:[%s682 + $0x4c] sm:$0xf]
        %v703 = vld [vmem:[%s682 + $0x50] sm:$0xf]
        %v704 = vld [vmem:[%s682 + $0x54] sm:$0xf]
        %v705 = vld [vmem:[%s682 + $0x58] sm:$0xf]
        %v706 = vld [vmem:[%s682 + $0x5c] sm:$0xf]
        %v707 = vld [vmem:[%s682 + $0x60] sm:$0xf]
        %v708 = vld [vmem:[%s682 + $0x64] sm:$0xf]
        %v709 = vld [vmem:[%s682 + $0x68] sm:$0xf]
        %v710 = vld [vmem:[%s682 + $0x6c] sm:$0xf]
        %v711 = vld [vmem:[%s682 + $0x70] sm:$0xf]
        %v712 = vld [vmem:[%s682 + $0x74] sm:$0xf]
        %v713 = vld [vmem:[%s682 + $0x78] sm:$0xf]
        %v714 = vld [vmem:[%s682 + $0x7c] sm:$0xf]
        %s715 = scalar_lea.vmem %s445, 1
        %v716 = vld [vmem:[%s715] sm:$0x1]
        %v718 = vlaneseq
        %v719 = vshrl.u32 %v718, 7
        %v720 = vsub.s32 0, %v719
        %v721 = vrot.slane %v716, %v720
        %v755 = vunpack.c.l.b16 %v683
        %v756 = vunpack.c.l.b16 %v684
        %v757 = vunpack.c.l.b16 %v685
        %v758 = vunpack.c.l.b16 %v686
        %v759 = vunpack.c.l.b16 %v687
        %v760 = vunpack.c.l.b16 %v688
        %v761 = vunpack.c.l.b16 %v689
        %v762 = vunpack.c.l.b16 %v690
        %v763 = vunpack.c.l.b16 %v691
        %v764 = vunpack.c.l.b16 %v692
        %v765 = vunpack.c.l.b16 %v693
        %v766 = vunpack.c.l.b16 %v694
        %v767 = vunpack.c.l.b16 %v695
        %v768 = vunpack.c.l.b16 %v696
        %v769 = vunpack.c.l.b16 %v697
        %v770 = vunpack.c.l.b16 %v698
        %v771 = vunpack.c.l.b16 %v699
        %v772 = vunpack.c.l.b16 %v700
        %v773 = vunpack.c.l.b16 %v701
        %v774 = vunpack.c.l.b16 %v702
        %v775 = vunpack.c.l.b16 %v703
        %v776 = vunpack.c.l.b16 %v704
        %v777 = vunpack.c.l.b16 %v705
        %v778 = vunpack.c.l.b16 %v706
        %v779 = vunpack.c.l.b16 %v707
        %v780 = vunpack.c.l.b16 %v708
        %v781 = vunpack.c.l.b16 %v709
        %v782 = vunpack.c.l.b16 %v710
        %v783 = vunpack.c.l.b16 %v711
        %v784 = vunpack.c.l.b16 %v712
        %v785 = vunpack.c.l.b16 %v713
        %v786 = vunpack.c.l.b16 %v714
        %v787 = vpack.c.b16 %v756, %v755
        %v788 = vpack.c.b16 %v758, %v757
        %v789 = vpack.c.b16 %v760, %v759
        %v790 = vpack.c.b16 %v762, %v761
        %v791 = vpack.c.b16 %v764, %v763
        %v792 = vpack.c.b16 %v766, %v765
        %v793 = vpack.c.b16 %v768, %v767
        %v794 = vpack.c.b16 %v770, %v769
        %v795 = vpack.c.b16 %v772, %v771
        %v796 = vpack.c.b16 %v774, %v773
        %v797 = vpack.c.b16 %v776, %v775
        %v798 = vpack.c.b16 %v778, %v777
        %v799 = vpack.c.b16 %v780, %v779
        %v800 = vpack.c.b16 %v782, %v781
        %v801 = vpack.c.b16 %v784, %v783
        %v802 = vpack.c.b16 %v786, %v785
        %819 = vmatprep.subr.bf16.mxu0 0
        %820 = vmatpush1.bf16.msra.mxu0 %v794
        %821 = vmatprep.subr.bf16.mxu0 0
        %822 = vmatpush1.bf16.msra.mxu0 %v793
        %823 = vmatprep.subr.bf16.mxu0 0
        %824 = vmatpush1.bf16.msra.mxu0 %v792
        %825 = vmatprep.subr.bf16.mxu0 0
        %826 = vmatpush1.bf16.msra.mxu0 %v791
        %827 = vmatprep.subr.bf16.mxu0 0
        %828 = vmatpush1.bf16.msra.mxu0 %v790
        %829 = vmatprep.subr.bf16.mxu0 0
        %830 = vmatpush1.bf16.msra.mxu0 %v789
        %831 = vmatprep.subr.bf16.mxu0 0
        %832 = vmatpush1.bf16.msra.mxu0 %v788
        %833 = vmatprep.subr.bf16.mxu0 0
        %834 = vmatpush1.bf16.msra.mxu0 %v787
        %835 = vmatprep.subr.bf16.mxu0 0
        %836 = vmatpush2.bf16.msra.mxu0 %v802
        %837 = vmatprep.subr.bf16.mxu0 0
        %838 = vmatpush2.bf16.msra.mxu0 %v801
        %839 = vmatprep.subr.bf16.mxu0 0
        %840 = vmatpush2.bf16.msra.mxu0 %v800
        %841 = vmatprep.subr.bf16.mxu0 0
        %842 = vmatpush2.bf16.msra.mxu0 %v799
        %843 = vmatprep.subr.bf16.mxu0 0
        %844 = vmatpush2.bf16.msra.mxu0 %v798
        %845 = vmatprep.subr.bf16.mxu0 0
        %846 = vmatpush2.bf16.msra.mxu0 %v797
        %847 = vmatprep.subr.bf16.mxu0 0
        %848 = vmatpush2.bf16.msra.mxu0 %v796
        %849 = vmatprep.subr.bf16.mxu0 0
        %850 = vmatpush2.bf16.msra.mxu0 %v795
        %851 = vmatprep.mubr.bf16.mxu0 %v539
        %852 = vmatmul.mubr.bf16.gmra.mxu0 %v538
        %v853 = vpop.f32.mrf.mxu0
        %v854 = vadd.f32 %v721, %v853
        %v855 = vpop.f32.mrf.mxu0
        %v856 = vpop.f32.mrf.mxu0
        %v857 = vpop.f32.mrf.mxu0
        %858 = vdwg.mxu0
        %s859 = scalar_lea.vmem %s438, 8
        %v860 = vld [vmem:[%s859] sm:$0xff]
        %v861 = vmul.f32 %v860, %v679
        %v862 = vadd.f32 %v854, %v861
        %s863 = scalar_lea.vmem %s378, 256 [#allocation8]
        %v864 = vld [vmem:[%s863] sm:$0xf]
        %v865 = vld [vmem:[%s863 + $0x4] sm:$0xf]
        %v866 = vld [vmem:[%s863 + $0x8] sm:$0xf]
        %v867 = vld [vmem:[%s863 + $0xc] sm:$0xf]
        %v868 = vld [vmem:[%s863 + $0x10] sm:$0xf]
        %v869 = vld [vmem:[%s863 + $0x14] sm:$0xf]
        %v870 = vld [vmem:[%s863 + $0x18] sm:$0xf]
        %v871 = vld [vmem:[%s863 + $0x1c] sm:$0xf]
        %v872 = vld [vmem:[%s863 + $0x20] sm:$0xf]
        %v873 = vld [vmem:[%s863 + $0x24] sm:$0xf]
        %v874 = vld [vmem:[%s863 + $0x28] sm:$0xf]
        %v875 = vld [vmem:[%s863 + $0x2c] sm:$0xf]
        %v876 = vld [vmem:[%s863 + $0x30] sm:$0xf]
        %v877 = vld [vmem:[%s863 + $0x34] sm:$0xf]
        %v878 = vld [vmem:[%s863 + $0x38] sm:$0xf]
        %v879 = vld [vmem:[%s863 + $0x3c] sm:$0xf]
        %v880 = vld [vmem:[%s863 + $0x40] sm:$0xf]
        %v881 = vld [vmem:[%s863 + $0x44] sm:$0xf]
        %v882 = vld [vmem:[%s863 + $0x48] sm:$0xf]
        %v883 = vld [vmem:[%s863 + $0x4c] sm:$0xf]
        %v884 = vld [vmem:[%s863 + $0x50] sm:$0xf]
        %v885 = vld [vmem:[%s863 + $0x54] sm:$0xf]
        %v886 = vld [vmem:[%s863 + $0x58] sm:$0xf]
        %v887 = vld [vmem:[%s863 + $0x5c] sm:$0xf]
        %v888 = vld [vmem:[%s863 + $0x60] sm:$0xf]
        %v889 = vld [vmem:[%s863 + $0x64] sm:$0xf]
        %v890 = vld [vmem:[%s863 + $0x68] sm:$0xf]
        %v891 = vld [vmem:[%s863 + $0x6c] sm:$0xf]
        %v892 = vld [vmem:[%s863 + $0x70] sm:$0xf]
        %v893 = vld [vmem:[%s863 + $0x74] sm:$0xf]
        %v894 = vld [vmem:[%s863 + $0x78] sm:$0xf]
        %v895 = vld [vmem:[%s863 + $0x7c] sm:$0xf]
        %s896 = scalar_lea.vmem %s445, 2
        %v897 = vld [vmem:[%s896] sm:$0x1]
        %v899 = vlaneseq
        %v900 = vshrl.u32 %v899, 7
        %v901 = vsub.s32 0, %v900
        %v902 = vrot.slane %v897, %v901
        %v936 = vunpack.c.l.b16 %v864
        %v937 = vunpack.c.l.b16 %v865
        %v938 = vunpack.c.l.b16 %v866
        %v939 = vunpack.c.l.b16 %v867
        %v940 = vunpack.c.l.b16 %v868
        %v941 = vunpack.c.l.b16 %v869
        %v942 = vunpack.c.l.b16 %v870
        %v943 = vunpack.c.l.b16 %v871
        %v944 = vunpack.c.l.b16 %v872
        %v945 = vunpack.c.l.b16 %v873
        %v946 = vunpack.c.l.b16 %v874
        %v947 = vunpack.c.l.b16 %v875
        %v948 = vunpack.c.l.b16 %v876
        %v949 = vunpack.c.l.b16 %v877
        %v950 = vunpack.c.l.b16 %v878
        %v951 = vunpack.c.l.b16 %v879
        %v952 = vunpack.c.l.b16 %v880
        %v953 = vunpack.c.l.b16 %v881
        %v954 = vunpack.c.l.b16 %v882
        %v955 = vunpack.c.l.b16 %v883
        %v956 = vunpack.c.l.b16 %v884
        %v957 = vunpack.c.l.b16 %v885
        %v958 = vunpack.c.l.b16 %v886
        %v959 = vunpack.c.l.b16 %v887
        %v960 = vunpack.c.l.b16 %v888
        %v961 = vunpack.c.l.b16 %v889
        %v962 = vunpack.c.l.b16 %v890
        %v963 = vunpack.c.l.b16 %v891
        %v964 = vunpack.c.l.b16 %v892
        %v965 = vunpack.c.l.b16 %v893
        %v966 = vunpack.c.l.b16 %v894
        %v967 = vunpack.c.l.b16 %v895
        %v968 = vpack.c.b16 %v937, %v936
        %v969 = vpack.c.b16 %v939, %v938
        %v970 = vpack.c.b16 %v941, %v940
        %v971 = vpack.c.b16 %v943, %v942
        %v972 = vpack.c.b16 %v945, %v944
        %v973 = vpack.c.b16 %v947, %v946
        %v974 = vpack.c.b16 %v949, %v948
        %v975 = vpack.c.b16 %v951, %v950
        %v976 = vpack.c.b16 %v953, %v952
        %v977 = vpack.c.b16 %v955, %v954
        %v978 = vpack.c.b16 %v957, %v956
        %v979 = vpack.c.b16 %v959, %v958
        %v980 = vpack.c.b16 %v961, %v960
        %v981 = vpack.c.b16 %v963, %v962
        %v982 = vpack.c.b16 %v965, %v964
        %v983 = vpack.c.b16 %v967, %v966
        %1000 = vmatprep.subr.bf16.mxu0 0
        %1001 = vmatpush1.bf16.msra.mxu0 %v975
        %1002 = vmatprep.subr.bf16.mxu0 0
        %1003 = vmatpush1.bf16.msra.mxu0 %v974
        %1004 = vmatprep.subr.bf16.mxu0 0
        %1005 = vmatpush1.bf16.msra.mxu0 %v973
        %1006 = vmatprep.subr.bf16.mxu0 0
        %1007 = vmatpush1.bf16.msra.mxu0 %v972
        %1008 = vmatprep.subr.bf16.mxu0 0
        %1009 = vmatpush1.bf16.msra.mxu0 %v971
        %1010 = vmatprep.subr.bf16.mxu0 0
        %1011 = vmatpush1.bf16.msra.mxu0 %v970
        %1012 = vmatprep.subr.bf16.mxu0 0
        %1013 = vmatpush1.bf16.msra.mxu0 %v969
        %1014 = vmatprep.subr.bf16.mxu0 0
        %1015 = vmatpush1.bf16.msra.mxu0 %v968
        %1016 = vmatprep.subr.bf16.mxu0 0
        %1017 = vmatpush2.bf16.msra.mxu0 %v983
        %1018 = vmatprep.subr.bf16.mxu0 0
        %1019 = vmatpush2.bf16.msra.mxu0 %v982
        %1020 = vmatprep.subr.bf16.mxu0 0
        %1021 = vmatpush2.bf16.msra.mxu0 %v981
        %1022 = vmatprep.subr.bf16.mxu0 0
        %1023 = vmatpush2.bf16.msra.mxu0 %v980
        %1024 = vmatprep.subr.bf16.mxu0 0
        %1025 = vmatpush2.bf16.msra.mxu0 %v979
        %1026 = vmatprep.subr.bf16.mxu0 0
        %1027 = vmatpush2.bf16.msra.mxu0 %v978
        %1028 = vmatprep.subr.bf16.mxu0 0
        %1029 = vmatpush2.bf16.msra.mxu0 %v977
        %1030 = vmatprep.subr.bf16.mxu0 0
        %1031 = vmatpush2.bf16.msra.mxu0 %v976
        %1032 = vmatprep.mubr.bf16.mxu0 %v539
        %1033 = vmatmul.mubr.bf16.gmra.mxu0 %v538
        %v1034 = vpop.f32.mrf.mxu0
        %v1035 = vadd.f32 %v902, %v1034
        %v1036 = vpop.f32.mrf.mxu0
        %v1037 = vpop.f32.mrf.mxu0
        %v1038 = vpop.f32.mrf.mxu0
        %1039 = vdwg.mxu0
        %s1040 = scalar_lea.vmem %s438, 16
        %v1041 = vld [vmem:[%s1040] sm:$0xff]
        %v1042 = vmul.f32 %v1041, %v679
        %v1043 = vadd.f32 %v1035, %v1042
        %s1044 = scalar_lea.vmem %s378, 384 [#allocation8]
        %v1045 = vld [vmem:[%s1044] sm:$0xf]
        %v1046 = vld [vmem:[%s1044 + $0x4] sm:$0xf]
        %v1047 = vld [vmem:[%s1044 + $0x8] sm:$0xf]
        %v1048 = vld [vmem:[%s1044 + $0xc] sm:$0xf]
        %v1049 = vld [vmem:[%s1044 + $0x10] sm:$0xf]
        %v1050 = vld [vmem:[%s1044 + $0x14] sm:$0xf]
        %v1051 = vld [vmem:[%s1044 + $0x18] sm:$0xf]
        %v1052 = vld [vmem:[%s1044 + $0x1c] sm:$0xf]
        %v1053 = vld [vmem:[%s1044 + $0x20] sm:$0xf]
        %v1054 = vld [vmem:[%s1044 + $0x24] sm:$0xf]
        %v1055 = vld [vmem:[%s1044 + $0x28] sm:$0xf]
        %v1056 = vld [vmem:[%s1044 + $0x2c] sm:$0xf]
        %v1057 = vld [vmem:[%s1044 + $0x30] sm:$0xf]
        %v1058 = vld [vmem:[%s1044 + $0x34] sm:$0xf]
        %v1059 = vld [vmem:[%s1044 + $0x38] sm:$0xf]
        %v1060 = vld [vmem:[%s1044 + $0x3c] sm:$0xf]
        %v1061 = vld [vmem:[%s1044 + $0x40] sm:$0xf]
        %v1062 = vld [vmem:[%s1044 + $0x44] sm:$0xf]
        %v1063 = vld [vmem:[%s1044 + $0x48] sm:$0xf]
        %v1064 = vld [vmem:[%s1044 + $0x4c] sm:$0xf]
        %v1065 = vld [vmem:[%s1044 + $0x50] sm:$0xf]
        %v1066 = vld [vmem:[%s1044 + $0x54] sm:$0xf]
        %v1067 = vld [vmem:[%s1044 + $0x58] sm:$0xf]
        %v1068 = vld [vmem:[%s1044 + $0x5c] sm:$0xf]
        %v1069 = vld [vmem:[%s1044 + $0x60] sm:$0xf]
        %v1070 = vld [vmem:[%s1044 + $0x64] sm:$0xf]
        %v1071 = vld [vmem:[%s1044 + $0x68] sm:$0xf]
        %v1072 = vld [vmem:[%s1044 + $0x6c] sm:$0xf]
        %v1073 = vld [vmem:[%s1044 + $0x70] sm:$0xf]
        %v1074 = vld [vmem:[%s1044 + $0x74] sm:$0xf]
        %v1075 = vld [vmem:[%s1044 + $0x78] sm:$0xf]
        %v1076 = vld [vmem:[%s1044 + $0x7c] sm:$0xf]
        %s1077 = scalar_lea.vmem %s445, 3
        %v1078 = vld [vmem:[%s1077] sm:$0x1]
        %v1080 = vlaneseq
        %v1081 = vshrl.u32 %v1080, 7
        %v1082 = vsub.s32 0, %v1081
        %v1083 = vrot.slane %v1078, %v1082
        %v1117 = vunpack.c.l.b16 %v1045
        %v1118 = vunpack.c.l.b16 %v1046
        %v1119 = vunpack.c.l.b16 %v1047
        %v1120 = vunpack.c.l.b16 %v1048
        %v1121 = vunpack.c.l.b16 %v1049
        %v1122 = vunpack.c.l.b16 %v1050
        %v1123 = vunpack.c.l.b16 %v1051
        %v1124 = vunpack.c.l.b16 %v1052
        %v1125 = vunpack.c.l.b16 %v1053
        %v1126 = vunpack.c.l.b16 %v1054
        %v1127 = vunpack.c.l.b16 %v1055
        %v1128 = vunpack.c.l.b16 %v1056
        %v1129 = vunpack.c.l.b16 %v1057
        %v1130 = vunpack.c.l.b16 %v1058
        %v1131 = vunpack.c.l.b16 %v1059
        %v1132 = vunpack.c.l.b16 %v1060
        %v1133 = vunpack.c.l.b16 %v1061
        %v1134 = vunpack.c.l.b16 %v1062
        %v1135 = vunpack.c.l.b16 %v1063
        %v1136 = vunpack.c.l.b16 %v1064
        %v1137 = vunpack.c.l.b16 %v1065
        %v1138 = vunpack.c.l.b16 %v1066
        %v1139 = vunpack.c.l.b16 %v1067
        %v1140 = vunpack.c.l.b16 %v1068
        %v1141 = vunpack.c.l.b16 %v1069
        %v1142 = vunpack.c.l.b16 %v1070
        %v1143 = vunpack.c.l.b16 %v1071
        %v1144 = vunpack.c.l.b16 %v1072
        %v1145 = vunpack.c.l.b16 %v1073
        %v1146 = vunpack.c.l.b16 %v1074
        %v1147 = vunpack.c.l.b16 %v1075
        %v1148 = vunpack.c.l.b16 %v1076
        %v1149 = vpack.c.b16 %v1118, %v1117
        %v1150 = vpack.c.b16 %v1120, %v1119
        %v1151 = vpack.c.b16 %v1122, %v1121
        %v1152 = vpack.c.b16 %v1124, %v1123
        %v1153 = vpack.c.b16 %v1126, %v1125
        %v1154 = vpack.c.b16 %v1128, %v1127
        %v1155 = vpack.c.b16 %v1130, %v1129
        %v1156 = vpack.c.b16 %v1132, %v1131
        %v1157 = vpack.c.b16 %v1134, %v1133
        %v1158 = vpack.c.b16 %v1136, %v1135
        %v1159 = vpack.c.b16 %v1138, %v1137
        %v1160 = vpack.c.b16 %v1140, %v1139
        %v1161 = vpack.c.b16 %v1142, %v1141
        %v1162 = vpack.c.b16 %v1144, %v1143
        %v1163 = vpack.c.b16 %v1146, %v1145
        %v1164 = vpack.c.b16 %v1148, %v1147
        %1181 = vmatprep.subr.bf16.mxu0 0
        %1182 = vmatpush1.bf16.msra.mxu0 %v1156
        %1183 = vmatprep.subr.bf16.mxu0 0
        %1184 = vmatpush1.bf16.msra.mxu0 %v1155
        %1185 = vmatprep.subr.bf16.mxu0 0
        %1186 = vmatpush1.bf16.msra.mxu0 %v1154
        %1187 = vmatprep.subr.bf16.mxu0 0
        %1188 = vmatpush1.bf16.msra.mxu0 %v1153
        %1189 = vmatprep.subr.bf16.mxu0 0
        %1190 = vmatpush1.bf16.msra.mxu0 %v1152
        %1191 = vmatprep.subr.bf16.mxu0 0
        %1192 = vmatpush1.bf16.msra.mxu0 %v1151
        %1193 = vmatprep.subr.bf16.mxu0 0
        %1194 = vmatpush1.bf16.msra.mxu0 %v1150
        %1195 = vmatprep.subr.bf16.mxu0 0
        %1196 = vmatpush1.bf16.msra.mxu0 %v1149
        %1197 = vmatprep.subr.bf16.mxu0 0
        %1198 = vmatpush2.bf16.msra.mxu0 %v1164
        %1199 = vmatprep.subr.bf16.mxu0 0
        %1200 = vmatpush2.bf16.msra.mxu0 %v1163
        %1201 = vmatprep.subr.bf16.mxu0 0
        %1202 = vmatpush2.bf16.msra.mxu0 %v1162
        %1203 = vmatprep.subr.bf16.mxu0 0
        %1204 = vmatpush2.bf16.msra.mxu0 %v1161
        %1205 = vmatprep.subr.bf16.mxu0 0
        %1206 = vmatpush2.bf16.msra.mxu0 %v1160
        %1207 = vmatprep.subr.bf16.mxu0 0
        %1208 = vmatpush2.bf16.msra.mxu0 %v1159
        %1209 = vmatprep.subr.bf16.mxu0 0
        %1210 = vmatpush2.bf16.msra.mxu0 %v1158
        %1211 = vmatprep.subr.bf16.mxu0 0
        %1212 = vmatpush2.bf16.msra.mxu0 %v1157
        %1213 = vmatprep.mubr.bf16.mxu0 %v539
        %1214 = vmatmul.mubr.bf16.gmra.mxu0 %v538
        %v1215 = vpop.f32.mrf.mxu0
        %v1216 = vadd.f32 %v1083, %v1215
        %v1217 = vpop.f32.mrf.mxu0
        %v1218 = vpop.f32.mrf.mxu0
        %v1219 = vpop.f32.mrf.mxu0
        %1220 = vdwg.mxu0
        %s1221 = scalar_lea.vmem %s438, 24
        %v1222 = vld [vmem:[%s1221] sm:$0xff]
        %v1223 = vmul.f32 %v1222, %v679
        %v1224 = vadd.f32 %v1216, %v1223
        %v1225 = vxor.u32 %v681, 2147483648
        %v1226 = vmul.f32 %v1225, 1.442695
        %v1227 = vpow.pop %v1226
        %v1228 = vadd.f32 %v1227, 1.0
        %v1229 = vrcp.pop %v1228
        %v1230 = vmul.f32 1.0, %v1229
        %v1231 = vxor.u32 %v862, 2147483648
        %v1232 = vmul.f32 %v1231, 1.442695
        %v1233 = vpow.pop %v1232
        %v1234 = vadd.f32 %v1233, 1.0
        %v1235 = vrcp.pop %v1234
        %v1236 = vmul.f32 1.0, %v1235
        %v1237 = vtanh.pop %v1043
        %v1238 = vxor.u32 %v1224, 2147483648
        %v1239 = vmul.f32 %v1238, 1.442695
        %v1240 = vpow.pop %v1239
        %v1241 = vadd.f32 %v1240, 1.0
        %v1242 = vrcp.pop %v1241
        %v1243 = vmul.f32 1.0, %v1242
        %v1244 = vmul.f32 %v1236, %v494
        %v1245 = vmul.f32 %v1230, %v1237
        %v1246 = vadd.f32 %v1244, %v1245
        %v1247 = vtanh.pop %v1246
        %v1248 = vmul.f32 %v1243, %v1247
        %1249 = vst [vmem:[%s427] sm:$0xff] %v1248
        %1250 = vst [vmem:[%s434] sm:$0xff] %v1246
        %v1251 = vpack.c.bf16 %v1248, %v1248
        // Predicated region
        $region65: #{_decoder_step.1} parent=43 // pred_check
          %p1252 = pneg %p472
        $region66: #{_decoder_step.1} parent=43 // pred_check_branch
          %1254 = sbr.rel (%p1252) target = $region68
        $region67: #{_decoder_step.1} parent=43 // pred_region
          %s1255 = smul.u32 %s471, 2
          %s1256 = smul.addr %s1255, 4
          %s1257 = scalar_lea.vmem [#allocation2], %s1256
          %1258 = vst [vmem:[%s1257] sm:$0xf] %v1251
        $region68: #{_decoder_step.1} parent=43 // pred_fallthru
          _
        %s1259 = sand.u32 %s210, 1
        %s1260 = scalar_lea.sflag [#allocation5], %s1259
        %s1261 = sand.u32 %s210, 1
        %s1262 = smul.addr %s1261, 8
        %s1263 = scalar_lea.vmem [#allocation9], %s1262
        %s1264 = sand.u32 %s238, 1
        %s1265 = scalar_lea.sflag [#allocation11], %s1264
        %s1266 = sand.u32 %s238, 1
        %s1267 = smul.addr %s1266, 8
        %s1268 = scalar_lea.vmem [#allocation10], %s1267
        // Predicated region
        $region69: #{_decoder_step.1} parent=43 // pred_check
          %p1269 = pneg %p220
        $region70: #{_decoder_step.1} parent=43 // pred_check_branch
          %1271 = sbr.rel (%p1269) target = $region72
        $region71: #{_decoder_step.1} parent=43 // pred_region
          %s1273 = ssub.s32 128, 128
          %1274 = vsyncadd %s1260, %s1273
          %s1275 = sadd.s32 %s36, %s35
          %s1276 = smul.addr %s1275, 128
          %s1277 = scalar_lea.hbm %s6, %s1276
          %s1279 = sshll.u32 %s1263, 4
          %s1280 = int_to_ptr.vmem [resolvable:$true] %s1279
          %1282 = dma.vmem_to_hbm [thread:$0]  %s1280, 128, %s1277, %s1260
        $region72: #{_decoder_step.1} parent=43 // pred_fallthru
          _
        // Predicated region
        $region73: #{_decoder_step.1} parent=43 // pred_check
          %p1283 = pneg %p248
        $region74: #{_decoder_step.1} parent=43 // pred_check_branch
          %1285 = sbr.rel (%p1283) target = $region76
        $region75: #{_decoder_step.1} parent=43 // pred_region
          %s1287 = ssub.s32 128, 128
          %1288 = vsyncadd %s1265, %s1287
          %s1289 = sadd.s32 %s36, %s35
          %s1290 = smul.addr %s1289, 128
          %s1291 = scalar_lea.hbm %s7, %s1290
          %s1293 = sshll.u32 %s1268, 4
          %s1294 = int_to_ptr.vmem [resolvable:$true] %s1293
          %1296 = dma.vmem_to_hbm [thread:$0]  %s1294, 128, %s1291, %s1265
        $region76: #{_decoder_step.1} parent=43 // pred_fallthru
          _
      $region44: #{_decoder_step.1} parent=5 // pred_fallthru
        _
      %p1297 = scmp.le.s32.totalorder 2, %s26
      // Predicated region
      $region77: #{_decoder_step.1} parent=5 // pred_check
        %p1298 = pneg %p1297
      $region78: #{_decoder_step.1} parent=5 // pred_check_branch
        %1300 = sbr.rel (%p1298) target = $region80
      $region79: #{_decoder_step.1} parent=5 // pred_region
        %s1301 = ssub.s32 %s26, 2
        // Predicated region
        $region81: #{_decoder_step.1} parent=79 // pred_check
          %p1302 = pneg %p226
        $region82: #{_decoder_step.1} parent=79 // pred_check_branch
          %1304 = sbr.rel (%p1302) target = $region84
        $region83: #{_decoder_step.1} parent=79 // pred_region
          %s1305 = sand.u32 %s211, 1
          %s1306 = scalar_lea.sflag [#allocation5], %s1305
          %s1307 = sand.u32 %s211, 1
          %s1308 = smul.addr %s1307, 8
          %s1309 = scalar_lea.vmem [#allocation9], %s1308
          %1310 = dma.done %s1306, 128
        $region84: #{_decoder_step.1} parent=79 // pred_fallthru
          _
        // Predicated region
        $region85: #{_decoder_step.1} parent=79 // pred_check
          %p1311 = pneg %p254
        $region86: #{_decoder_step.1} parent=79 // pred_check_branch
          %1313 = sbr.rel (%p1311) target = $region88
        $region87: #{_decoder_step.1} parent=79 // pred_region
          %s1314 = sand.u32 %s239, 1
          %s1315 = scalar_lea.sflag [#allocation11], %s1314
          %s1316 = sand.u32 %s239, 1
          %s1317 = smul.addr %s1316, 8
          %s1318 = scalar_lea.vmem [#allocation10], %s1317
          %1319 = dma.done %s1315, 128
        $region88: #{_decoder_step.1} parent=79 // pred_fallthru
          _
      $region80: #{_decoder_step.1} parent=5 // pred_fallthru
        _
    $region6: #{_decoder_step.1} parent=1 // loop_footer
      %s30 = sadd.s32 1, %s26
    $region7: #{_decoder_step.1} parent=1 // loop_footer_branch
      %25 = sbr.rel target = $region3
    $region8: #{_decoder_step.1} parent=1 // loop_exit
      _
    %1320 = vsyncpa [#allocation4], 1
    %s1321 = scalar_lea.sflag [#allocation4], 1
    %1322 = vsyncpa %s1321, 1
    %1323 = vsyncpa [#allocation7], 1
    %s1324 = scalar_lea.sflag [#allocation7], 1
    %1325 = vsyncpa %s1324, 1
    %1326 = vsyncpa [#allocation5], 1
    %s1327 = scalar_lea.sflag [#allocation5], 1
    %1328 = vsyncpa %s1327, 1
    %1329 = vsyncpa [#allocation11], 1
    %s1330 = scalar_lea.sflag [#allocation11], 1
    %1331 = vsyncpa %s1330, 1

</llo_original>
